<compile_context>
chip_gen: v7x
topology: tpu7x:2x2x1
jax: 0.10.0
libtpu: 0.0.40
codegen_flags: <defaults>
</compile_context>

<pallas_src>
import jax
import jax.numpy as jnp
from jax.experimental import pallas as pl
from jax.experimental.pallas import tpu as pltpu


def _round_up(x: int, m: int) -> int:
    return ((x + m - 1) // m) * m


def _linear_disp_kernel(feat_ref, w_ref, b_ref, disp_ref, out_ref):
    """out = disp + (feat_packed @ w_blockdiag)[:, :G] + b   (params pre-scaled by 1/N)."""
    g = out_ref.shape[1]
    f = feat_ref[...].astype(jnp.float32)                              # [tile, G*C]
    # Single MXU matmul against the resident block-diagonal weight.
    lin = jnp.dot(f, w_ref[...], preferred_element_type=jnp.float32)   # [tile, 128]
    out = disp_ref[...].astype(jnp.float32) + lin[:, :g] + b_ref[0]    # [tile, G]
    out_ref[...] = out.astype(out_ref.dtype)


def _xla_fallback(feat, init_disp, weight, bias, inv_n):
    lin = jnp.einsum(
        "...c,oc->...o",
        feat.astype(jnp.float32),
        weight.astype(jnp.float32),
        precision="highest",
    )[..., 0] + bias.astype(jnp.float32)[0]
    return (init_disp.astype(jnp.float32) + lin * inv_n).astype(init_disp.dtype)


def linear_sigmoid(feat, init_disp, weight, bias, *,
                   max_tile_bytes: int = 4 << 20,
                   min_pallas_rows: int = 2048):
    """feat: [B, N, C]; init_disp: [B, N]; weight: [1, C] (or [C]); bias: [1]."""
    B, N, C = feat.shape
    R = B * N
    inv_n = 1.0 / float(init_disp.shape[1])

    # Tiny problems: pallas_call fixed cost dwarfs the work -> fused XLA.
    if R < min_pallas_rows:
        return _xla_fallback(feat, init_disp, weight, bias, inv_n)

    # Pack G rows of C channels onto the 128-lane axis when the row-major
    # reshape is free (no HBM copy). Otherwise keep C as the lane axis.
    if C <= 128 and 128 % C == 0 and R % (128 // C) == 0:
        G = 128 // C
    else:
        G = 1
    R2 = R // G
    GC = G * C

    feat2 = feat.reshape(R2, GC)            # free view (row-major)
    disp2 = init_disp.reshape(R2, G)        # free view

    # Fold 1/N into the tiny params; build a block-diagonal [GC, 128] weight so
    # column g contracts the channels of packed row-slot g (columns >= G zero).
    w_vec = weight.reshape(-1).astype(jnp.float32) * inv_n                    # [C]
    eye = jnp.eye(G, dtype=jnp.float32)                                       # [G, G]
    w_cols = (eye[:, None, :] * w_vec[None, :, None]).reshape(GC, G)          # [GC, G]
    w_mat = jnp.zeros((GC, 128), jnp.float32).at[:, :G].set(w_cols)           # [GC, 128]
    b_scaled = (bias.astype(jnp.float32) * inv_n).reshape(1)                  # [1]

    # Row-tile: big enough to amortize the ~0.35us per-grid-step overhead
    # (<= max_tile_bytes of feat per buffer), small enough to keep >= ~4 grid
    # steps for v7x megacore. Always a multiple of 8 (sublane rule).
    bytes_per_row = GC * jnp.dtype(feat.dtype).itemsize
    tile_budget = max(8, (max_tile_bytes // bytes_per_row) // 8 * 8)
    tile = max(8, min(tile_budget, _round_up(pl.cdiv(R2, 4), 8)))
    grid = (pl.cdiv(R2, tile),)             # partial last block handled by Pallas

    out2d = pl.pallas_call(
        _linear_disp_kernel,
        out_shape=jax.ShapeDtypeStruct((R2, G), init_disp.dtype),
        grid=grid,
        in_specs=[
            pl.BlockSpec((tile, GC), lambda i: (i, 0)),     # feat tile (double-buffered)
            pl.BlockSpec((GC, 128), lambda i: (0, 0)),      # scaled weight, resident
            pl.BlockSpec(memory_space=pltpu.SMEM),          # scaled bias scalar
            pl.BlockSpec((tile, G), lambda i: (i, 0)),      # init_disp tile
        ],
        out_specs=pl.BlockSpec((tile, G), lambda i: (i, 0)),
        compiler_params=pltpu.CompilerParams(
            dimension_semantics=("parallel",),              # megacore split on v7x
            vmem_limit_bytes=32 * 1024 * 1024,              # explicit headroom (v5e default 16 MiB)
        ),
    )(feat2, w_mat, b_scaled, disp2)

    return out2d.reshape(B, N)


if __name__ == "__main__":
    C = 32                                    # in_ch
    key = jax.random.PRNGKey(0)
    k_w, k_b, k_f1, k_d1, k_f2, k_d2 = jax.random.split(key, 6)

    # Deterministic nn.Linear(in_ch, 1)-style params (uniform +-1/sqrt(in_ch)).
    bound = 1.0 / (C ** 0.5)
    weight = jax.random.uniform(k_w, (1, C), jnp.float32, -bound, bound)
    bias = jax.random.uniform(k_b, (1,), jnp.float32, -bound, bound)

    def reference(feat, init_disp):
        lin = jnp.einsum("bnc,oc->bno", feat, weight,
                         precision="highest")[..., 0] + bias[0]
        return init_disp + lin * (1.0 / init_disp.shape[1])

    # --- small module-scale shapes (batch=2, disparity positions=8, in_ch=32);
    #     goes through the fused-XLA small-R path. ---
    B, N = 2, 8
    feat_s = jax.random.normal(k_f1, (B, N, C), dtype=jnp.float32)
    disp_s = jax.random.uniform(k_d1, (B, N), jnp.float32) * 4.0 + 1.0
    out_s = jax.block_until_ready(linear_sigmoid(feat_s, disp_s, weight, bias))
    assert out_s.shape == (B, N)
    assert jnp.allclose(out_s, reference(feat_s, disp_s), atol=1e-5, rtol=1e-5)

    # --- larger shape that exercises the Pallas kernel (packed [R/4, 128]
    #     layout, multi-step grid, partial final block). ---
    B2, N2 = 2, 4100
    feat_l = jax.random.normal(k_f2, (B2, N2, C), dtype=jnp.float32)
    disp_l = jax.random.uniform(k_d2, (B2, N2), jnp.float32) * 4.0 + 1.0
    out_l = jax.block_until_ready(linear_sigmoid(feat_l, disp_l, weight, bias))
    assert out_l.shape == (B2, N2)
    assert jnp.allclose(out_l, reference(feat_l, disp_l), atol=1e-5, rtol=1e-5)

    print("KERNEL_OK")
</pallas_src>

<mosaic_0001>
module attributes {stable_mosaic.version = 11 : i64} {
  func.func @_linear_disp_kernel(%arg0: i32, %arg1: memref<520x128xf32, #tpu.memory_space<vmem>>, %arg2: memref<128x128xf32, #tpu.memory_space<vmem>>, %arg3: memref<1xf32, #tpu.memory_space<smem>>, %arg4: memref<520x4xf32, #tpu.memory_space<vmem>>, %arg5: memref<520x4xf32, #tpu.memory_space<vmem>>) attributes {dimension_semantics = [#tpu.dimension_semantics<parallel>], iteration_bounds = array<i64: 4>, scalar_prefetch = 0 : i64, scratch_operands = 0 : i64, tpu.core_type = #tpu.core_type<tc>, window_params = [{transform_indices = @transform_0, window_bounds = array<i64: 520, 128>}, {pipeline_mode = #tpu.pipeline_mode<synchronous>, transform_indices = @transform_1, window_bounds = array<i64: 128, 128>}, {transform_indices = @transform_2, window_bounds = array<i64: 1>}, {transform_indices = @transform_3, window_bounds = array<i64: 520, 4>}, {transform_indices = @transform_4, window_bounds = array<i64: 520, 4>}]} {
    %c0 = arith.constant 0 : index
    %c0_0 = arith.constant 0 : index
    %0 = vector.load %arg1[%c0, %c0_0] : memref<520x128xf32, #tpu.memory_space<vmem>>, vector<520x128xf32>
    %c0_1 = arith.constant 0 : index
    %c0_2 = arith.constant 0 : index
    %1 = vector.load %arg2[%c0_1, %c0_2] : memref<128x128xf32, #tpu.memory_space<vmem>>, vector<128x128xf32>
    %cst = arith.constant dense<0.000000e+00> : vector<520x128xf32>
    %2 = tpu.matmul %0, %1, %cst {dimension_numbers = #tpu.dot_dimension_numbers<[1], [0], [0], [1], [0, 0, 1, 1], [], []>} : vector<520x128xf32>, vector<128x128xf32>, vector<520x128xf32> -> vector<520x128xf32>
    %c0_3 = arith.constant 0 : index
    %c0_4 = arith.constant 0 : index
    %3 = vector.load %arg4[%c0_3, %c0_4] : memref<520x4xf32, #tpu.memory_space<vmem>>, vector<520x4xf32>
    %4 = vector.extract_strided_slice %2 {offsets = [0, 0], sizes = [520, 4], strides = [1, 1]} : vector<520x128xf32> to vector<520x4xf32>
    %5 = arith.addf %3, %4 : vector<520x4xf32>
    %c0_5 = arith.constant 0 : index
    %6 = memref.load %arg3[%c0_5] : memref<1xf32, #tpu.memory_space<smem>>
    %7 = vector.broadcast %6 : f32 to vector<520x4xf32>
    %8 = arith.addf %5, %7 : vector<520x4xf32>
    %c0_6 = arith.constant 0 : index
    %c0_7 = arith.constant 0 : index
    %9 = vector.load %arg5[%c0_6, %c0_7] : memref<520x4xf32, #tpu.memory_space<vmem>>, vector<520x4xf32>
    tpu.vector_store %arg5[%c0_6, %c0_7], %8 {strides = array<i32>} : memref<520x4xf32, #tpu.memory_space<vmem>>, vector<520x4xf32>,
    return
  }
  func.func @transform_0(%arg0: i32) -> (i32, i32) {
    %c0_i32 = arith.constant 0 : i32
    %c0_i32_0 = arith.constant 0 : i32
    return %arg0, %c0_i32 : i32, i32
  }
  func.func @transform_1(%arg0: i32) -> (i32, i32) {
    %c0_i32 = arith.constant 0 : i32
    %c0_i32_0 = arith.constant 0 : i32
    %c0_i32_1 = arith.constant 0 : i32
    return %c0_i32, %c0_i32_0 : i32, i32
  }
  func.func @transform_2(%arg0: i32) -> i32 {
    %c0_i32 = arith.constant 0 : i32
    %c0_i32_0 = arith.constant 0 : i32
    return %c0_i32 : i32
  }
  func.func @transform_3(%arg0: i32) -> (i32, i32) {
    %c0_i32 = arith.constant 0 : i32
    %c0_i32_0 = arith.constant 0 : i32
    return %arg0, %c0_i32 : i32, i32
  }
  func.func @transform_4(%arg0: i32) -> (i32, i32) {
    %c0_i32 = arith.constant 0 : i32
    %c0_i32_0 = arith.constant 0 : i32
    return %arg0, %c0_i32 : i32, i32
  }
}

</mosaic_0001>

<llo_original>
// kernel: tpu_custom_call.1
$region0: #{tpu_custom_call.1}
  #allocation0 [shape = 'u32[]', space=smem, size = 0x4, offset = 0x4, fixed_abs, tag = 'smem constant byte address 0x4 - core index']
  #allocation1 [shape = 'u32[144,128]{1,0:T(1,128)}', space=vmem, size = 0x12000, scoped, tag = 'internal scratch']
  #allocation2 [shape = 'f32[1]{0:T(128)S(6)}', space=smem, size = 0x200, scoped, tag = 'scoped memory for tpu_custom_call.1']
  %s0 = inlined_call_operand.vmem [shape: f32[2050,128], index: 0, kind: input, shape index: {}]
  %s1 = inlined_call_operand.hbm [shape: f32[128,128], index: 1, kind: input, shape index: {}]
  %s2 = inlined_call_operand.<no memory space> [shape: f32[1], index: 2, kind: input, shape index: {}]
  %s3 = inlined_call_operand.vmem [shape: f32[2050,4], index: 3, kind: input, shape index: {}]
  %s4 = inlined_call_operand.vmem [shape: f32[2050,4], index: 4, kind: output, shape index: {}]
  %s5 = sld [smem:[#allocation0]]
  $region101: #{tpu_custom_call.1} parent=0
    _
  %s7 = ssub.s32 1, %s5
  %s8 = scalar_select 0, %s7, %s5
  %9 = sst [smem:[#allocation2]] %s2
  $region1: #{tpu_custom_call.1} parent=0
    #allocation3 [shape = 'u8[65536]{0}', space=vmem, size = 0x10000, scoped, tag = 'input window, operand 1, single buffered']
    #allocation4 [shape = 's32[2]{0}', space=sflag, size = 0x8, scoped, tag = 'scoped memory for tpu_custom_call.1']
    #allocation5 [shape = 'u8[532480]{0}', space=vmem, size = 0x82000, scoped, tag = 'output window, operand 0']
    %10 = vsyncpa [#allocation4], 0
    loop: start=0, step=1, limit=6
    $region2: #{tpu_custom_call.1} parent=1 // loop_pre_header
      _
    $region3: #{tpu_custom_call.1} parent=1 // loop_header
      %s12 = sphi 0, %s16
      %p13 = scmp.ge.s32.totalorder %s12, 6
      %s22 = sphi 0, %s24
      %s25 = sphi 0, %s22
      %s26 = sphi 0, %s25
      %s42 = sphi 0, %s26
      %s46 = sphi 0, %s46
      %s48 = sphi 0, %s46
      %s49 = sphi 0, %s48
      %s63 = sphi 0, %s49
      %s67 = sphi 0, %s67
      %s69 = sphi 0, %s67
      %s70 = sphi 0, %s69
      %s84 = sphi 0, %s70
      %s90 = sphi 0, %s92
      %s93 = sphi 0, %s90
      %s94 = sphi 0, %s93
      %s110 = sphi 0, %s94
      %s116 = sphi 0, %s118
      %s119 = sphi 0, %s116
      %s120 = sphi 0, %s119
      %s136 = sphi 0, %s120
    $region4: #{tpu_custom_call.1} parent=1 // loop_header_branch
      %15 = sbr.rel (%p13) target = $region8
    $region5: #{tpu_custom_call.1} parent=1 // loop_body
      %s17 = ssub.s32 %s12, 1
      %s18 = ssub.s32 %s12, 2
      %s19 = sadd.s32 %s12, 1
      %s20 = ssub.s32 %s12, %s19
      %p21 = scmp.eq.s32.totalorder %s20, 0
      %s23 = sadd.s32 %s22, 1
      %s24 = scalar_select %p21, %s22, %s23
      %p27 = pneg %p21
      %p28 = scmp.eq.s32.totalorder %s12, 3
      %p29 = por %p27, %p28
      %p30 = scmp.ne.s32.totalorder %s22, %s25
      %p31 = scmp.eq.s32.totalorder %s12, 0
      %p32 = por %p30, %p31
      %p33 = scmp.ne.s32.totalorder %s22, %s25
      %p34 = scmp.eq.s32.totalorder %s17, 3
      %p35 = por %p33, %p34
      %p36 = scmp.ne.s32.totalorder %s25, %s26
      %p37 = scmp.eq.s32.totalorder %s17, 0
      %p38 = por %p36, %p37
      %p39 = scmp.ne.s32.totalorder %s25, %s26
      %p40 = scmp.eq.s32.totalorder %s18, 3
      %p41 = por %p39, %p40
      %p43 = scmp.ne.s32.totalorder %s26, %s42
      %p44 = scmp.eq.s32.totalorder %s18, 0
      %p45 = por %p43, %p44
      %s47 = sadd.s32 %s46, 1
      %p50 = scmp.eq.s32.totalorder %s12, 3
      %p51 = scmp.ne.s32.totalorder %s46, %s48
      %p52 = scmp.eq.s32.totalorder %s12, 0
      %p53 = por %p51, %p52
      %p54 = scmp.ne.s32.totalorder %s46, %s48
      %p55 = scmp.eq.s32.totalorder %s17, 3
      %p56 = por %p54, %p55
      %p57 = scmp.ne.s32.totalorder %s48, %s49
      %p58 = scmp.eq.s32.totalorder %s17, 0
      %p59 = por %p57, %p58
      %p60 = scmp.ne.s32.totalorder %s48, %s49
      %p61 = scmp.eq.s32.totalorder %s18, 3
      %p62 = por %p60, %p61
      %p64 = scmp.ne.s32.totalorder %s49, %s63
      %p65 = scmp.eq.s32.totalorder %s18, 0
      %p66 = por %p64, %p65
      %s68 = sadd.s32 %s67, 1
      %p71 = scmp.eq.s32.totalorder %s12, 3
      %p72 = scmp.ne.s32.totalorder %s67, %s69
      %p73 = scmp.eq.s32.totalorder %s12, 0
      %p74 = por %p72, %p73
      %p75 = scmp.ne.s32.totalorder %s67, %s69
      %p76 = scmp.eq.s32.totalorder %s17, 3
      %p77 = por %p75, %p76
      %p78 = scmp.ne.s32.totalorder %s69, %s70
      %p79 = scmp.eq.s32.totalorder %s17, 0
      %p80 = por %p78, %p79
      %p81 = scmp.ne.s32.totalorder %s69, %s70
      %p82 = scmp.eq.s32.totalorder %s18, 3
      %p83 = por %p81, %p82
      %p85 = scmp.ne.s32.totalorder %s70, %s84
      %p86 = scmp.eq.s32.totalorder %s18, 0
      %p87 = por %p85, %p86
      %s88 = ssub.s32 %s12, %s19
      %p89 = scmp.eq.s32.totalorder %s88, 0
      %s91 = sadd.s32 %s90, 1
      %s92 = scalar_select %p89, %s90, %s91
      %p95 = pneg %p89
      %p96 = scmp.eq.s32.totalorder %s12, 3
      %p97 = por %p95, %p96
      %p98 = scmp.ne.s32.totalorder %s90, %s93
      %p99 = scmp.eq.s32.totalorder %s12, 0
      %p100 = por %p98, %p99
      %p101 = scmp.ne.s32.totalorder %s90, %s93
      %p102 = scmp.eq.s32.totalorder %s17, 3
      %p103 = por %p101, %p102
      %p104 = scmp.ne.s32.totalorder %s93, %s94
      %p105 = scmp.eq.s32.totalorder %s17, 0
      %p106 = por %p104, %p105
      %p107 = scmp.ne.s32.totalorder %s93, %s94
      %p108 = scmp.eq.s32.totalorder %s18, 3
      %p109 = por %p107, %p108
      %p111 = scmp.ne.s32.totalorder %s94, %s110
      %p112 = scmp.eq.s32.totalorder %s18, 0
      %p113 = por %p111, %p112
      %s114 = ssub.s32 %s12, %s19
      %p115 = scmp.eq.s32.totalorder %s114, 0
      %s117 = sadd.s32 %s116, 1
      %s118 = scalar_select %p115, %s116, %s117
      %p121 = pneg %p115
      %p122 = scmp.eq.s32.totalorder %s12, 3
      %p123 = por %p121, %p122
      %p124 = scmp.ne.s32.totalorder %s116, %s119
      %p125 = scmp.eq.s32.totalorder %s12, 0
      %p126 = por %p124, %p125
      %p127 = scmp.ne.s32.totalorder %s116, %s119
      %p128 = scmp.eq.s32.totalorder %s17, 3
      %p129 = por %p127, %p128
      %p130 = scmp.ne.s32.totalorder %s119, %s120
      %p131 = scmp.eq.s32.totalorder %s17, 0
      %p132 = por %p130, %p131
      %p133 = scmp.ne.s32.totalorder %s119, %s120
      %p134 = scmp.eq.s32.totalorder %s18, 3
      %p135 = por %p133, %p134
      %p137 = scmp.ne.s32.totalorder %s120, %s136
      %p138 = scmp.eq.s32.totalorder %s18, 0
      %p139 = por %p137, %p138
      %p140 = scmp.le.s32.totalorder 1, %s12
      %p141 = scmp.lt.s32.totalorder %s12, 5
      %p142 = pnand %p140, %p141
      %p143 = pneg %p142
      // Predicated region
      $region9: #{tpu_custom_call.1} parent=5 // pred_check
        _
      $region10: #{tpu_custom_call.1} parent=5 // pred_check_branch
        %145 = sbr.rel (%p142) target = $region12
      $region11: #{tpu_custom_call.1} parent=5 // pred_region
        %s146 = ssub.s32 %s12, 1
        // Predicated region
        $region13: #{tpu_custom_call.1} parent=11 // pred_check
          %p147 = pneg %p59
        $region14: #{tpu_custom_call.1} parent=11 // pred_check_branch
          %149 = sbr.rel (%p147) target = $region16
        $region15: #{tpu_custom_call.1} parent=11 // pred_region
          %s151 = ssub.s32 2048, 2048
          %152 = vsyncadd [#allocation4], %s151
          %s153 = sshll.u32 [#allocation3], 4
          %s154 = int_to_ptr.vmem [resolvable:$true] %s153
          %159 = dma.hbm_to_vmem [thread:$0]  %s1, 2048, %s154, [#allocation4], 128, 128, 8
        $region16: #{tpu_custom_call.1} parent=11 // pred_fallthru
          _
        // Predicated region
        $region17: #{tpu_custom_call.1} parent=11 // pred_check
          %p160 = pneg %p80
        $region18: #{tpu_custom_call.1} parent=11 // pred_check_branch
          %162 = sbr.rel (%p160) target = $region20
        $region19: #{tpu_custom_call.1} parent=11 // pred_region
          _
        $region20: #{tpu_custom_call.1} parent=11 // pred_fallthru
          _
      $region12: #{tpu_custom_call.1} parent=5 // pred_fallthru
        _
      %p163 = scmp.lt.s32.totalorder %s12, 4
      // Predicated region
      $region21: #{tpu_custom_call.1} parent=5 // pred_check
        %p164 = pneg %p163
      $region22: #{tpu_custom_call.1} parent=5 // pred_check_branch
        %166 = sbr.rel (%p164) target = $region24
      $region23: #{tpu_custom_call.1} parent=5 // pred_region
        // Predicated region
        $region25: #{tpu_custom_call.1} parent=23 // pred_check
          %p167 = pneg %p32
        $region26: #{tpu_custom_call.1} parent=23 // pred_check_branch
          %169 = sbr.rel (%p167) target = $region28
        $region27: #{tpu_custom_call.1} parent=23 // pred_region
          %s170 = smul.u32 65, %s12
          %s171 = ssub.s32 257, %s170
          %p172 = scmp.lt.s32.totalorder %s171, 65
          %s173 = scalar_select %p172, %s171, 65
          %s174 = smul.u32 128, %s173
          %p175 = scmp.lt.s32.totalorder %s170, 256
          %s176 = scalar_select %p175, %s170, 256
          %s177 = smul.addr %s176, 8
          %s178 = scalar_lea.vmem %s0, %s177
          %s179 = smul.u32 65, %s12
          %s180 = ssub.s32 257, %s179
          %p181 = scmp.lt.s32.totalorder %s180, 65
          %s182 = scalar_select %p181, %s180, 65
          %s183 = smul.u32 128, %s182
        $region28: #{tpu_custom_call.1} parent=23 // pred_fallthru
          _
        // Predicated region
        $region29: #{tpu_custom_call.1} parent=23 // pred_check
          %p184 = pneg %p100
        $region30: #{tpu_custom_call.1} parent=23 // pred_check_branch
          %186 = sbr.rel (%p184) target = $region32
        $region31: #{tpu_custom_call.1} parent=23 // pred_region
          %s187 = smul.u32 65, %s12
          %s188 = ssub.s32 257, %s187
          %p189 = scmp.lt.s32.totalorder %s188, 65
          %s190 = scalar_select %p189, %s188, 65
          %s191 = smul.u32 128, %s190
          %p192 = scmp.lt.s32.totalorder %s187, 256
          %s193 = scalar_select %p192, %s187, 256
          %s194 = smul.addr %s193, 8
          %s195 = scalar_lea.vmem %s3, %s194
          %s196 = smul.u32 65, %s12
          %s197 = ssub.s32 257, %s196
          %p198 = scmp.lt.s32.totalorder %s197, 65
          %s199 = scalar_select %p198, %s197, 65
          %s200 = smul.u32 128, %s199
        $region32: #{tpu_custom_call.1} parent=23 // pred_fallthru
          _
      $region24: #{tpu_custom_call.1} parent=5 // pred_fallthru
        _
      %p201 = scmp.le.s32.totalorder 1, %s12
      %p202 = scmp.lt.s32.totalorder %s12, 5
      %p203 = pnand %p201, %p202
      %p204 = pneg %p203
      // Predicated region
      $region33: #{tpu_custom_call.1} parent=5 // pred_check
        _
      $region34: #{tpu_custom_call.1} parent=5 // pred_check_branch
        %206 = sbr.rel (%p203) target = $region36
      $region35: #{tpu_custom_call.1} parent=5 // pred_region
        %s207 = ssub.s32 %s12, 1
        // Predicated region
        $region37: #{tpu_custom_call.1} parent=35 // pred_check
          %p208 = pneg %p59
        $region38: #{tpu_custom_call.1} parent=35 // pred_check_branch
          %210 = sbr.rel (%p208) target = $region40
        $region39: #{tpu_custom_call.1} parent=35 // pred_region
          %211 = dma.done [#allocation4], 2048
        $region40: #{tpu_custom_call.1} parent=35 // pred_fallthru
          _
        %s212 = smul.u32 65, %s17
        %s213 = ssub.s32 257, %s212
        %p214 = scmp.lt.s32.totalorder %s213, 65
        %s215 = scalar_select %p214, %s213, 65
        %s216 = smul.u32 128, %s215
        %p217 = scmp.lt.s32.totalorder %s212, 256
        %s218 = scalar_select %p217, %s212, 256
        %s219 = smul.addr %s218, 8
        %s220 = scalar_lea.vmem %s0, %s219
        %p221 = pneg %p38
        %p222 = pneg %p35
        %p223 = pneg %p59
        %p224 = pneg %p56
        %p225 = pneg %p80
        %p226 = pneg %p77
        %s227 = smul.u32 65, %s17
        %s228 = ssub.s32 257, %s227
        %p229 = scmp.lt.s32.totalorder %s228, 65
        %s230 = scalar_select %p229, %s228, 65
        %s231 = smul.u32 128, %s230
        %p232 = scmp.lt.s32.totalorder %s227, 256
        %s233 = scalar_select %p232, %s227, 256
        %s234 = smul.addr %s233, 8
        %s235 = scalar_lea.vmem %s3, %s234
        %p236 = pneg %p106
        %p237 = pneg %p103
        %p238 = pneg %p132
        %p239 = pneg %p129
        %s240 = sand.u32 %s119, 1
        %s241 = sand.u32 %s119, 1
        %s242 = smul.addr %s241, 520
        %s243 = scalar_lea.vmem [#allocation5], %s242
        %s244 = smul.u32 65, %s17
        %s245 = ssub.s32 257, %s244
        %p246 = scmp.lt.s32.totalorder %s245, 65
        %s247 = scalar_select %p246, %s245, 65
        %s248 = smul.u32 128, %s247
        %p249 = scmp.lt.s32.totalorder %s244, 256
        %s250 = scalar_select %p249, %s244, 256
        %s251 = smul.addr %s250, 8
        %s252 = scalar_lea.vmem %s0, %s251
        %s253 = smul.u32 65, %s17
        %s254 = ssub.s32 257, %s253
        %p255 = scmp.lt.s32.totalorder %s254, 65
        %s256 = scalar_select %p255, %s254, 65
        %s257 = smul.u32 128, %s256
        %s258 = smul.u32 65, %s17
        %s259 = ssub.s32 257, %s258
        %p260 = scmp.lt.s32.totalorder %s259, 65
        %s261 = scalar_select %p260, %s259, 65
        %s262 = smul.u32 128, %s261
        %p263 = scmp.lt.s32.totalorder %s258, 256
        %s264 = scalar_select %p263, %s258, 256
        %s265 = smul.addr %s264, 8
        %s266 = scalar_lea.vmem %s3, %s265
        %s267 = smul.u32 65, %s17
        %s268 = ssub.s32 257, %s267
        %p269 = scmp.lt.s32.totalorder %s268, 65
        %s270 = scalar_select %p269, %s268, 65
        %s271 = smul.u32 128, %s270
        %s272 = smul.u32 65, %s17
        %s273 = ssub.s32 257, %s272
        %p274 = scmp.lt.s32.totalorder %s273, 65
        %s275 = scalar_select %p274, %s273, 65
        %s276 = smul.u32 128, %s275
        %v277 = vld [vmem:[%s252] sm:$0xff]
        %v278 = vld [vmem:[%s252 + $0x8] sm:$0xff]
        %v279 = vld [vmem:[%s252 + $0x10] sm:$0xff]
        %v280 = vld [vmem:[%s252 + $0x18] sm:$0xff]
        %v281 = vld [vmem:[%s252 + $0x20] sm:$0xff]
        %v282 = vld [vmem:[%s252 + $0x28] sm:$0xff]
        %v283 = vld [vmem:[%s252 + $0x30] sm:$0xff]
        %v284 = vld [vmem:[%s252 + $0x38] sm:$0xff]
        %v285 = vld [vmem:[%s252 + $0x40] sm:$0xff]
        %v286 = vld [vmem:[%s252 + $0x48] sm:$0xff]
        %v287 = vld [vmem:[%s252 + $0x50] sm:$0xff]
        %v288 = vld [vmem:[%s252 + $0x58] sm:$0xff]
        %v289 = vld [vmem:[%s252 + $0x60] sm:$0xff]
        %v290 = vld [vmem:[%s252 + $0x68] sm:$0xff]
        %v291 = vld [vmem:[%s252 + $0x70] sm:$0xff]
        %v292 = vld [vmem:[%s252 + $0x78] sm:$0xff]
        %v293 = vld [vmem:[%s252 + $0x80] sm:$0xff]
        %v294 = vld [vmem:[%s252 + $0x88] sm:$0xff]
        %v295 = vld [vmem:[%s252 + $0x90] sm:$0xff]
        %v296 = vld [vmem:[%s252 + $0x98] sm:$0xff]
        %v297 = vld [vmem:[%s252 + $0xa0] sm:$0xff]
        %v298 = vld [vmem:[%s252 + $0xa8] sm:$0xff]
        %v299 = vld [vmem:[%s252 + $0xb0] sm:$0xff]
        %v300 = vld [vmem:[%s252 + $0xb8] sm:$0xff]
        %v301 = vld [vmem:[%s252 + $0xc0] sm:$0xff]
        %v302 = vld [vmem:[%s252 + $0xc8] sm:$0xff]
        %v303 = vld [vmem:[%s252 + $0xd0] sm:$0xff]
        %v304 = vld [vmem:[%s252 + $0xd8] sm:$0xff]
        %v305 = vld [vmem:[%s252 + $0xe0] sm:$0xff]
        %v306 = vld [vmem:[%s252 + $0xe8] sm:$0xff]
        %v307 = vld [vmem:[%s252 + $0xf0] sm:$0xff]
        %v308 = vld [vmem:[%s252 + $0xf8] sm:$0xff]
        %v309 = vld [vmem:[%s252 + $0x100] sm:$0xff]
        %v310 = vld [vmem:[%s252 + $0x108] sm:$0xff]
        %v311 = vld [vmem:[%s252 + $0x110] sm:$0xff]
        %v312 = vld [vmem:[%s252 + $0x118] sm:$0xff]
        %v313 = vld [vmem:[%s252 + $0x120] sm:$0xff]
        %v314 = vld [vmem:[%s252 + $0x128] sm:$0xff]
        %v315 = vld [vmem:[%s252 + $0x130] sm:$0xff]
        %v316 = vld [vmem:[%s252 + $0x138] sm:$0xff]
        %v317 = vld [vmem:[%s252 + $0x140] sm:$0xff]
        %v318 = vld [vmem:[%s252 + $0x148] sm:$0xff]
        %v319 = vld [vmem:[%s252 + $0x150] sm:$0xff]
        %v320 = vld [vmem:[%s252 + $0x158] sm:$0xff]
        %v321 = vld [vmem:[%s252 + $0x160] sm:$0xff]
        %v322 = vld [vmem:[%s252 + $0x168] sm:$0xff]
        %v323 = vld [vmem:[%s252 + $0x170] sm:$0xff]
        %v324 = vld [vmem:[%s252 + $0x178] sm:$0xff]
        %v325 = vld [vmem:[%s252 + $0x180] sm:$0xff]
        %v326 = vld [vmem:[%s252 + $0x188] sm:$0xff]
        %v327 = vld [vmem:[%s252 + $0x190] sm:$0xff]
        %v328 = vld [vmem:[%s252 + $0x198] sm:$0xff]
        %v329 = vld [vmem:[%s252 + $0x1a0] sm:$0xff]
        %v330 = vld [vmem:[%s252 + $0x1a8] sm:$0xff]
        %v331 = vld [vmem:[%s252 + $0x1b0] sm:$0xff]
        %v332 = vld [vmem:[%s252 + $0x1b8] sm:$0xff]
        %v333 = vld [vmem:[%s252 + $0x1c0] sm:$0xff]
        %v334 = vld [vmem:[%s252 + $0x1c8] sm:$0xff]
        %v335 = vld [vmem:[%s252 + $0x1d0] sm:$0xff]
        %v336 = vld [vmem:[%s252 + $0x1d8] sm:$0xff]
        %v337 = vld [vmem:[%s252 + $0x1e0] sm:$0xff]
        %v338 = vld [vmem:[%s252 + $0x1e8] sm:$0xff]
        %v339 = vld [vmem:[%s252 + $0x1f0] sm:$0xff]
        %v340 = vld [vmem:[%s252 + $0x1f8] sm:$0xff]
        %v341 = vld [vmem:[%s252 + $0x200] sm:$0xff]
        %v342 = vld [vmem:[#allocation3] sm:$0xff]
        %v343 = vld [vmem:[#allocation3 + $0x8] sm:$0xff]
        %v344 = vld [vmem:[#allocation3 + $0x10] sm:$0xff]
        %v345 = vld [vmem:[#allocation3 + $0x18] sm:$0xff]
        %v346 = vld [vmem:[#allocation3 + $0x20] sm:$0xff]
        %v347 = vld [vmem:[#allocation3 + $0x28] sm:$0xff]
        %v348 = vld [vmem:[#allocation3 + $0x30] sm:$0xff]
        %v349 = vld [vmem:[#allocation3 + $0x38] sm:$0xff]
        %v350 = vld [vmem:[#allocation3 + $0x40] sm:$0xff]
        %v351 = vld [vmem:[#allocation3 + $0x48] sm:$0xff]
        %v352 = vld [vmem:[#allocation3 + $0x50] sm:$0xff]
        %v353 = vld [vmem:[#allocation3 + $0x58] sm:$0xff]
        %v354 = vld [vmem:[#allocation3 + $0x60] sm:$0xff]
        %v355 = vld [vmem:[#allocation3 + $0x68] sm:$0xff]
        %v356 = vld [vmem:[#allocation3 + $0x70] sm:$0xff]
        %v357 = vld [vmem:[#allocation3 + $0x78] sm:$0xff]
        %358 = vmatprep.subr.mxu0 0.0
        %359 = vmatpush1.msra.mxu0 %v342
        %360 = vmatprep.subr.mxu0 0.0
        %361 = vmatpush1.msra.mxu0 %v343
        %362 = vmatprep.subr.mxu0 0.0
        %363 = vmatpush1.msra.mxu0 %v344
        %364 = vmatprep.subr.mxu0 0.0
        %365 = vmatpush1.msra.mxu0 %v345
        %366 = vmatprep.subr.mxu0 0.0
        %367 = vmatpush1.msra.mxu0 %v346
        %368 = vmatprep.subr.mxu0 0.0
        %369 = vmatpush1.msra.mxu0 %v347
        %370 = vmatprep.subr.mxu0 0.0
        %371 = vmatpush1.msra.mxu0 %v348
        %372 = vmatprep.subr.mxu0 0.0
        %373 = vmatpush1.msra.mxu0 %v349
        %374 = vmatprep.subr.mxu0 0.0
        %375 = vmatpush1.msra.mxu0 %v350
        %376 = vmatprep.subr.mxu0 0.0
        %377 = vmatpush1.msra.mxu0 %v351
        %378 = vmatprep.subr.mxu0 0.0
        %379 = vmatpush1.msra.mxu0 %v352
        %380 = vmatprep.subr.mxu0 0.0
        %381 = vmatpush1.msra.mxu0 %v353
        %382 = vmatprep.subr.mxu0 0.0
        %383 = vmatpush1.msra.mxu0 %v354
        %384 = vmatprep.subr.mxu0 0.0
        %385 = vmatpush1.msra.mxu0 %v355
        %386 = vmatprep.subr.mxu0 0.0
        %387 = vmatpush1.msra.mxu0 %v356
        %388 = vmatprep.subr.mxu0 0.0
        %389 = vmatpush1.msra.mxu0 %v357
        %390 = vmatprep.subr.mxu0 0.0
        %391 = vmatpush1.msra.mxu0 0.0
        %392 = vmatprep.subr.mxu0 0.0
        %393 = vmatpush1.msra.mxu0 0.0
        %394 = vmatprep.subr.mxu0 0.0
        %395 = vmatpush1.msra.mxu0 0.0
        %396 = vmatprep.subr.mxu0 0.0
        %397 = vmatpush1.msra.mxu0 0.0
        %398 = vmatprep.subr.mxu0 0.0
        %399 = vmatpush1.msra.mxu0 0.0
        %400 = vmatprep.subr.mxu0 0.0
        %401 = vmatpush1.msra.mxu0 0.0
        %402 = vmatprep.subr.mxu0 0.0
        %403 = vmatpush1.msra.mxu0 0.0
        %404 = vmatprep.subr.mxu0 0.0
        %405 = vmatpush1.msra.mxu0 0.0
        %406 = vmatprep.subr.mxu0 0.0
        %407 = vmatpush1.msra.mxu0 0.0
        %408 = vmatprep.subr.mxu0 0.0
        %409 = vmatpush1.msra.mxu0 0.0
        %410 = vmatprep.subr.mxu0 0.0
        %411 = vmatpush1.msra.mxu0 0.0
        %412 = vmatprep.subr.mxu0 0.0
        %413 = vmatpush1.msra.mxu0 0.0
        %414 = vmatprep.subr.mxu0 0.0
        %415 = vmatpush1.msra.mxu0 0.0
        %416 = vmatprep.subr.mxu0 0.0
        %417 = vmatpush1.msra.mxu0 0.0
        %418 = vmatprep.subr.mxu0 0.0
        %419 = vmatpush1.msra.mxu0 0.0
        %420 = vmatprep.subr.mxu0 0.0
        %421 = vmatpush1.msra.mxu0 0.0
        %422 = vmatprep.mubr.f32.mxu0 0.0
        %423 = vmatmul.mubr.f32.gmra.mrb[0].mxu0 %v277
        %v424 = vpop.f32.mrb[0].mxu0
        %v425 = vadd.f32 0.0, %v424
        %v426 = vpop.f32.mrb[0].mxu0
        %427 = vmatprep.mubr.f32.mxu0 0.0
        %428 = vmatmul.mubr.f32.gmra.mrb[0].mxu0 %v278
        %v429 = vpop.f32.mrb[0].mxu0
        %v430 = vadd.f32 0.0, %v429
        %v431 = vpop.f32.mrb[0].mxu0
        %432 = vmatprep.mubr.f32.mxu0 0.0
        %433 = vmatmul.mubr.f32.gmra.mrb[0].mxu0 %v279
        %v434 = vpop.f32.mrb[0].mxu0
        %v435 = vadd.f32 0.0, %v434
        %v436 = vpop.f32.mrb[0].mxu0
        %437 = vmatprep.mubr.f32.mxu0 0.0
        %438 = vmatmul.mubr.f32.gmra.mrb[0].mxu0 %v280
        %v439 = vpop.f32.mrb[0].mxu0
        %v440 = vadd.f32 0.0, %v439
        %v441 = vpop.f32.mrb[0].mxu0
        %442 = vmatprep.mubr.f32.mxu0 0.0
        %443 = vmatmul.mubr.f32.gmra.mrb[0].mxu0 %v281
        %v444 = vpop.f32.mrb[0].mxu0
        %v445 = vadd.f32 0.0, %v444
        %v446 = vpop.f32.mrb[0].mxu0
        %447 = vmatprep.mubr.f32.mxu0 0.0
        %448 = vmatmul.mubr.f32.gmra.mrb[0].mxu0 %v282
        %v449 = vpop.f32.mrb[0].mxu0
        %v450 = vadd.f32 0.0, %v449
        %v451 = vpop.f32.mrb[0].mxu0
        %452 = vmatprep.mubr.f32.mxu0 0.0
        %453 = vmatmul.mubr.f32.gmra.mrb[0].mxu0 %v283
        %v454 = vpop.f32.mrb[0].mxu0
        %v455 = vadd.f32 0.0, %v454
        %v456 = vpop.f32.mrb[0].mxu0
        %457 = vmatprep.mubr.f32.mxu0 0.0
        %458 = vmatmul.mubr.f32.gmra.mrb[0].mxu0 %v284
        %v459 = vpop.f32.mrb[0].mxu0
        %v460 = vadd.f32 0.0, %v459
        %v461 = vpop.f32.mrb[0].mxu0
        %462 = vmatprep.mubr.f32.mxu0 0.0
        %463 = vmatmul.mubr.f32.gmra.mrb[0].mxu0 %v285
        %v464 = vpop.f32.mrb[0].mxu0
        %v465 = vadd.f32 0.0, %v464
        %v466 = vpop.f32.mrb[0].mxu0
        %467 = vmatprep.mubr.f32.mxu0 0.0
        %468 = vmatmul.mubr.f32.gmra.mrb[0].mxu0 %v286
        %v469 = vpop.f32.mrb[0].mxu0
        %v470 = vadd.f32 0.0, %v469
        %v471 = vpop.f32.mrb[0].mxu0
        %472 = vmatprep.mubr.f32.mxu0 0.0
        %473 = vmatmul.mubr.f32.gmra.mrb[0].mxu0 %v287
        %v474 = vpop.f32.mrb[0].mxu0
        %v475 = vadd.f32 0.0, %v474
        %v476 = vpop.f32.mrb[0].mxu0
        %477 = vmatprep.mubr.f32.mxu0 0.0
        %478 = vmatmul.mubr.f32.gmra.mrb[0].mxu0 %v288
        %v479 = vpop.f32.mrb[0].mxu0
        %v480 = vadd.f32 0.0, %v479
        %v481 = vpop.f32.mrb[0].mxu0
        %482 = vmatprep.mubr.f32.mxu0 0.0
        %483 = vmatmul.mubr.f32.gmra.mrb[0].mxu0 %v289
        %v484 = vpop.f32.mrb[0].mxu0
        %v485 = vadd.f32 0.0, %v484
        %v486 = vpop.f32.mrb[0].mxu0
        %487 = vmatprep.mubr.f32.mxu0 0.0
        %488 = vmatmul.mubr.f32.gmra.mrb[0].mxu0 %v290
        %v489 = vpop.f32.mrb[0].mxu0
        %v490 = vadd.f32 0.0, %v489
        %v491 = vpop.f32.mrb[0].mxu0
        %492 = vmatprep.mubr.f32.mxu0 0.0
        %493 = vmatmul.mubr.f32.gmra.mrb[0].mxu0 %v291
        %v494 = vpop.f32.mrb[0].mxu0
        %v495 = vadd.f32 0.0, %v494
        %v496 = vpop.f32.mrb[0].mxu0
        %497 = vmatprep.mubr.f32.mxu0 0.0
        %498 = vmatmul.mubr.f32.gmra.mrb[0].mxu0 %v292
        %v499 = vpop.f32.mrb[0].mxu0
        %v500 = vadd.f32 0.0, %v499
        %v501 = vpop.f32.mrb[0].mxu0
        %502 = vmatprep.mubr.f32.mxu0 0.0
        %503 = vmatmul.mubr.f32.gmra.mrb[0].mxu0 %v293
        %v504 = vpop.f32.mrb[0].mxu0
        %v505 = vadd.f32 0.0, %v504
        %v506 = vpop.f32.mrb[0].mxu0
        %507 = vmatprep.mubr.f32.mxu0 0.0
        %508 = vmatmul.mubr.f32.gmra.mrb[0].mxu0 %v294
        %v509 = vpop.f32.mrb[0].mxu0
        %v510 = vadd.f32 0.0, %v509
        %v511 = vpop.f32.mrb[0].mxu0
        %512 = vmatprep.mubr.f32.mxu0 0.0
        %513 = vmatmul.mubr.f32.gmra.mrb[0].mxu0 %v295
        %v514 = vpop.f32.mrb[0].mxu0
        %v515 = vadd.f32 0.0, %v514
        %v516 = vpop.f32.mrb[0].mxu0
        %517 = vmatprep.mubr.f32.mxu0 0.0
        %518 = vmatmul.mubr.f32.gmra.mrb[0].mxu0 %v296
        %v519 = vpop.f32.mrb[0].mxu0
        %v520 = vadd.f32 0.0, %v519
        %v521 = vpop.f32.mrb[0].mxu0
        %522 = vmatprep.mubr.f32.mxu0 0.0
        %523 = vmatmul.mubr.f32.gmra.mrb[0].mxu0 %v297
        %v524 = vpop.f32.mrb[0].mxu0
        %v525 = vadd.f32 0.0, %v524
        %v526 = vpop.f32.mrb[0].mxu0
        %527 = vmatprep.mubr.f32.mxu0 0.0
        %528 = vmatmul.mubr.f32.gmra.mrb[0].mxu0 %v298
        %v529 = vpop.f32.mrb[0].mxu0
        %v530 = vadd.f32 0.0, %v529
        %v531 = vpop.f32.mrb[0].mxu0
        %532 = vmatprep.mubr.f32.mxu0 0.0
        %533 = vmatmul.mubr.f32.gmra.mrb[0].mxu0 %v299
        %v534 = vpop.f32.mrb[0].mxu0
        %v535 = vadd.f32 0.0, %v534
        %v536 = vpop.f32.mrb[0].mxu0
        %537 = vmatprep.mubr.f32.mxu0 0.0
        %538 = vmatmul.mubr.f32.gmra.mrb[0].mxu0 %v300
        %v539 = vpop.f32.mrb[0].mxu0
        %v540 = vadd.f32 0.0, %v539
        %v541 = vpop.f32.mrb[0].mxu0
        %542 = vmatprep.mubr.f32.mxu0 0.0
        %543 = vmatmul.mubr.f32.gmra.mrb[0].mxu0 %v301
        %v544 = vpop.f32.mrb[0].mxu0
        %v545 = vadd.f32 0.0, %v544
        %v546 = vpop.f32.mrb[0].mxu0
        %547 = vmatprep.mubr.f32.mxu0 0.0
        %548 = vmatmul.mubr.f32.gmra.mrb[0].mxu0 %v302
        %v549 = vpop.f32.mrb[0].mxu0
        %v550 = vadd.f32 0.0, %v549
        %v551 = vpop.f32.mrb[0].mxu0
        %552 = vmatprep.mubr.f32.mxu0 0.0
        %553 = vmatmul.mubr.f32.gmra.mrb[0].mxu0 %v303
        %v554 = vpop.f32.mrb[0].mxu0
        %v555 = vadd.f32 0.0, %v554
        %v556 = vpop.f32.mrb[0].mxu0
        %557 = vmatprep.mubr.f32.mxu0 0.0
        %558 = vmatmul.mubr.f32.gmra.mrb[0].mxu0 %v304
        %v559 = vpop.f32.mrb[0].mxu0
        %v560 = vadd.f32 0.0, %v559
        %v561 = vpop.f32.mrb[0].mxu0
        %562 = vmatprep.mubr.f32.mxu0 0.0
        %563 = vmatmul.mubr.f32.gmra.mrb[0].mxu0 %v305
        %v564 = vpop.f32.mrb[0].mxu0
        %v565 = vadd.f32 0.0, %v564
        %v566 = vpop.f32.mrb[0].mxu0
        %567 = vmatprep.mubr.f32.mxu0 0.0
        %568 = vmatmul.mubr.f32.gmra.mrb[0].mxu0 %v306
        %v569 = vpop.f32.mrb[0].mxu0
        %v570 = vadd.f32 0.0, %v569
        %v571 = vpop.f32.mrb[0].mxu0
        %572 = vmatprep.mubr.f32.mxu0 0.0
        %573 = vmatmul.mubr.f32.gmra.mrb[0].mxu0 %v307
        %v574 = vpop.f32.mrb[0].mxu0
        %v575 = vadd.f32 0.0, %v574
        %v576 = vpop.f32.mrb[0].mxu0
        %577 = vmatprep.mubr.f32.mxu0 0.0
        %578 = vmatmul.mubr.f32.gmra.mrb[0].mxu0 %v308
        %v579 = vpop.f32.mrb[0].mxu0
        %v580 = vadd.f32 0.0, %v579
        %v581 = vpop.f32.mrb[0].mxu0
        %582 = vmatprep.mubr.f32.mxu0 0.0
        %583 = vmatmul.mubr.f32.gmra.mrb[0].mxu0 %v309
        %v584 = vpop.f32.mrb[0].mxu0
        %v585 = vadd.f32 0.0, %v584
        %v586 = vpop.f32.mrb[0].mxu0
        %587 = vmatprep.mubr.f32.mxu0 0.0
        %588 = vmatmul.mubr.f32.gmra.mrb[0].mxu0 %v310
        %v589 = vpop.f32.mrb[0].mxu0
        %v590 = vadd.f32 0.0, %v589
        %v591 = vpop.f32.mrb[0].mxu0
        %592 = vmatprep.mubr.f32.mxu0 0.0
        %593 = vmatmul.mubr.f32.gmra.mrb[0].mxu0 %v311
        %v594 = vpop.f32.mrb[0].mxu0
        %v595 = vadd.f32 0.0, %v594
        %v596 = vpop.f32.mrb[0].mxu0
        %597 = vmatprep.mubr.f32.mxu0 0.0
        %598 = vmatmul.mubr.f32.gmra.mrb[0].mxu0 %v312
        %v599 = vpop.f32.mrb[0].mxu0
        %v600 = vadd.f32 0.0, %v599
        %v601 = vpop.f32.mrb[0].mxu0
        %602 = vmatprep.mubr.f32.mxu0 0.0
        %603 = vmatmul.mubr.f32.gmra.mrb[0].mxu0 %v313
        %v604 = vpop.f32.mrb[0].mxu0
        %v605 = vadd.f32 0.0, %v604
        %v606 = vpop.f32.mrb[0].mxu0
        %607 = vmatprep.mubr.f32.mxu0 0.0
        %608 = vmatmul.mubr.f32.gmra.mrb[0].mxu0 %v314
        %v609 = vpop.f32.mrb[0].mxu0
        %v610 = vadd.f32 0.0, %v609
        %v611 = vpop.f32.mrb[0].mxu0
        %612 = vmatprep.mubr.f32.mxu0 0.0
        %613 = vmatmul.mubr.f32.gmra.mrb[0].mxu0 %v315
        %v614 = vpop.f32.mrb[0].mxu0
        %v615 = vadd.f32 0.0, %v614
        %v616 = vpop.f32.mrb[0].mxu0
        %617 = vmatprep.mubr.f32.mxu0 0.0
        %618 = vmatmul.mubr.f32.gmra.mrb[0].mxu0 %v316
        %v619 = vpop.f32.mrb[0].mxu0
        %v620 = vadd.f32 0.0, %v619
        %v621 = vpop.f32.mrb[0].mxu0
        %622 = vmatprep.mubr.f32.mxu0 0.0
        %623 = vmatmul.mubr.f32.gmra.mrb[0].mxu0 %v317
        %v624 = vpop.f32.mrb[0].mxu0
        %v625 = vadd.f32 0.0, %v624
        %v626 = vpop.f32.mrb[0].mxu0
        %627 = vmatprep.mubr.f32.mxu0 0.0
        %628 = vmatmul.mubr.f32.gmra.mrb[0].mxu0 %v318
        %v629 = vpop.f32.mrb[0].mxu0
        %v630 = vadd.f32 0.0, %v629
        %v631 = vpop.f32.mrb[0].mxu0
        %632 = vmatprep.mubr.f32.mxu0 0.0
        %633 = vmatmul.mubr.f32.gmra.mrb[0].mxu0 %v319
        %v634 = vpop.f32.mrb[0].mxu0
        %v635 = vadd.f32 0.0, %v634
        %v636 = vpop.f32.mrb[0].mxu0
        %637 = vmatprep.mubr.f32.mxu0 0.0
        %638 = vmatmul.mubr.f32.gmra.mrb[0].mxu0 %v320
        %v639 = vpop.f32.mrb[0].mxu0
        %v640 = vadd.f32 0.0, %v639
        %v641 = vpop.f32.mrb[0].mxu0
        %642 = vmatprep.mubr.f32.mxu0 0.0
        %643 = vmatmul.mubr.f32.gmra.mrb[0].mxu0 %v321
        %v644 = vpop.f32.mrb[0].mxu0
        %v645 = vadd.f32 0.0, %v644
        %v646 = vpop.f32.mrb[0].mxu0
        %647 = vmatprep.mubr.f32.mxu0 0.0
        %648 = vmatmul.mubr.f32.gmra.mrb[0].mxu0 %v322
        %v649 = vpop.f32.mrb[0].mxu0
        %v650 = vadd.f32 0.0, %v649
        %v651 = vpop.f32.mrb[0].mxu0
        %652 = vmatprep.mubr.f32.mxu0 0.0
        %653 = vmatmul.mubr.f32.gmra.mrb[0].mxu0 %v323
        %v654 = vpop.f32.mrb[0].mxu0
        %v655 = vadd.f32 0.0, %v654
        %v656 = vpop.f32.mrb[0].mxu0
        %657 = vmatprep.mubr.f32.mxu0 0.0
        %658 = vmatmul.mubr.f32.gmra.mrb[0].mxu0 %v324
        %v659 = vpop.f32.mrb[0].mxu0
        %v660 = vadd.f32 0.0, %v659
        %v661 = vpop.f32.mrb[0].mxu0
        %662 = vmatprep.mubr.f32.mxu0 0.0
        %663 = vmatmul.mubr.f32.gmra.mrb[0].mxu0 %v325
        %v664 = vpop.f32.mrb[0].mxu0
        %v665 = vadd.f32 0.0, %v664
        %v666 = vpop.f32.mrb[0].mxu0
        %667 = vmatprep.mubr.f32.mxu0 0.0
        %668 = vmatmul.mubr.f32.gmra.mrb[0].mxu0 %v326
        %v669 = vpop.f32.mrb[0].mxu0
        %v670 = vadd.f32 0.0, %v669
        %v671 = vpop.f32.mrb[0].mxu0
        %672 = vmatprep.mubr.f32.mxu0 0.0
        %673 = vmatmul.mubr.f32.gmra.mrb[0].mxu0 %v327
        %v674 = vpop.f32.mrb[0].mxu0
        %v675 = vadd.f32 0.0, %v674
        %v676 = vpop.f32.mrb[0].mxu0
        %677 = vmatprep.mubr.f32.mxu0 0.0
        %678 = vmatmul.mubr.f32.gmra.mrb[0].mxu0 %v328
        %v679 = vpop.f32.mrb[0].mxu0
        %v680 = vadd.f32 0.0, %v679
        %v681 = vpop.f32.mrb[0].mxu0
        %682 = vmatprep.mubr.f32.mxu0 0.0
        %683 = vmatmul.mubr.f32.gmra.mrb[0].mxu0 %v329
        %v684 = vpop.f32.mrb[0].mxu0
        %v685 = vadd.f32 0.0, %v684
        %v686 = vpop.f32.mrb[0].mxu0
        %687 = vmatprep.mubr.f32.mxu0 0.0
        %688 = vmatmul.mubr.f32.gmra.mrb[0].mxu0 %v330
        %v689 = vpop.f32.mrb[0].mxu0
        %v690 = vadd.f32 0.0, %v689
        %v691 = vpop.f32.mrb[0].mxu0
        %692 = vmatprep.mubr.f32.mxu0 0.0
        %693 = vmatmul.mubr.f32.gmra.mrb[0].mxu0 %v331
        %v694 = vpop.f32.mrb[0].mxu0
        %v695 = vadd.f32 0.0, %v694
        %v696 = vpop.f32.mrb[0].mxu0
        %697 = vmatprep.mubr.f32.mxu0 0.0
        %698 = vmatmul.mubr.f32.gmra.mrb[0].mxu0 %v332
        %v699 = vpop.f32.mrb[0].mxu0
        %v700 = vadd.f32 0.0, %v699
        %v701 = vpop.f32.mrb[0].mxu0
        %702 = vmatprep.mubr.f32.mxu0 0.0
        %703 = vmatmul.mubr.f32.gmra.mrb[0].mxu0 %v333
        %v704 = vpop.f32.mrb[0].mxu0
        %v705 = vadd.f32 0.0, %v704
        %v706 = vpop.f32.mrb[0].mxu0
        %707 = vmatprep.mubr.f32.mxu0 0.0
        %708 = vmatmul.mubr.f32.gmra.mrb[0].mxu0 %v334
        %v709 = vpop.f32.mrb[0].mxu0
        %v710 = vadd.f32 0.0, %v709
        %v711 = vpop.f32.mrb[0].mxu0
        %712 = vmatprep.mubr.f32.mxu0 0.0
        %713 = vmatmul.mubr.f32.gmra.mrb[0].mxu0 %v335
        %v714 = vpop.f32.mrb[0].mxu0
        %v715 = vadd.f32 0.0, %v714
        %v716 = vpop.f32.mrb[0].mxu0
        %717 = vmatprep.mubr.f32.mxu0 0.0
        %718 = vmatmul.mubr.f32.gmra.mrb[0].mxu0 %v336
        %v719 = vpop.f32.mrb[0].mxu0
        %v720 = vadd.f32 0.0, %v719
        %v721 = vpop.f32.mrb[0].mxu0
        %722 = vmatprep.mubr.f32.mxu0 0.0
        %723 = vmatmul.mubr.f32.gmra.mrb[0].mxu0 %v337
        %v724 = vpop.f32.mrb[0].mxu0
        %v725 = vadd.f32 0.0, %v724
        %v726 = vpop.f32.mrb[0].mxu0
        %727 = vmatprep.mubr.f32.mxu0 0.0
        %728 = vmatmul.mubr.f32.gmra.mrb[0].mxu0 %v338
        %v729 = vpop.f32.mrb[0].mxu0
        %v730 = vadd.f32 0.0, %v729
        %v731 = vpop.f32.mrb[0].mxu0
        %732 = vmatprep.mubr.f32.mxu0 0.0
        %733 = vmatmul.mubr.f32.gmra.mrb[0].mxu0 %v339
        %v734 = vpop.f32.mrb[0].mxu0
        %v735 = vadd.f32 0.0, %v734
        %v736 = vpop.f32.mrb[0].mxu0
        %737 = vmatprep.mubr.f32.mxu0 0.0
        %738 = vmatmul.mubr.f32.gmra.mrb[0].mxu0 %v340
        %v739 = vpop.f32.mrb[0].mxu0
        %v740 = vadd.f32 0.0, %v739
        %v741 = vpop.f32.mrb[0].mxu0
        %742 = vmatprep.mubr.f32.mxu0 0.0
        %743 = vmatmul.mubr.f32.gmra.mrb[0].mxu0 %v341
        %v744 = vpop.f32.mrb[0].mxu0
        %v745 = vadd.f32 0.0, %v744
        %v746 = vpop.f32.mrb[0].mxu0
        %747 = vdwg.mxu0
        %v748 = vld [vmem:[%s266] sm:$0xff]
        %v749 = vld [vmem:[%s266 + $0x8] sm:$0xff]
        %v750 = vld [vmem:[%s266 + $0x10] sm:$0xff]
        %v751 = vld [vmem:[%s266 + $0x18] sm:$0xff]
        %v752 = vld [vmem:[%s266 + $0x20] sm:$0xff]
        %v753 = vld [vmem:[%s266 + $0x28] sm:$0xff]
        %v754 = vld [vmem:[%s266 + $0x30] sm:$0xff]
        %v755 = vld [vmem:[%s266 + $0x38] sm:$0xff]
        %v756 = vld [vmem:[%s266 + $0x40] sm:$0xff]
        %v757 = vld [vmem:[%s266 + $0x48] sm:$0xff]
        %v758 = vld [vmem:[%s266 + $0x50] sm:$0xff]
        %v759 = vld [vmem:[%s266 + $0x58] sm:$0xff]
        %v760 = vld [vmem:[%s266 + $0x60] sm:$0xff]
        %v761 = vld [vmem:[%s266 + $0x68] sm:$0xff]
        %v762 = vld [vmem:[%s266 + $0x70] sm:$0xff]
        %v763 = vld [vmem:[%s266 + $0x78] sm:$0xff]
        %v764 = vld [vmem:[%s266 + $0x80] sm:$0xff]
        %v765 = vld [vmem:[%s266 + $0x88] sm:$0xff]
        %v766 = vld [vmem:[%s266 + $0x90] sm:$0xff]
        %v767 = vld [vmem:[%s266 + $0x98] sm:$0xff]
        %v768 = vld [vmem:[%s266 + $0xa0] sm:$0xff]
        %v769 = vld [vmem:[%s266 + $0xa8] sm:$0xff]
        %v770 = vld [vmem:[%s266 + $0xb0] sm:$0xff]
        %v771 = vld [vmem:[%s266 + $0xb8] sm:$0xff]
        %v772 = vld [vmem:[%s266 + $0xc0] sm:$0xff]
        %v773 = vld [vmem:[%s266 + $0xc8] sm:$0xff]
        %v774 = vld [vmem:[%s266 + $0xd0] sm:$0xff]
        %v775 = vld [vmem:[%s266 + $0xd8] sm:$0xff]
        %v776 = vld [vmem:[%s266 + $0xe0] sm:$0xff]
        %v777 = vld [vmem:[%s266 + $0xe8] sm:$0xff]
        %v778 = vld [vmem:[%s266 + $0xf0] sm:$0xff]
        %v779 = vld [vmem:[%s266 + $0xf8] sm:$0xff]
        %v780 = vld [vmem:[%s266 + $0x100] sm:$0xff]
        %v781 = vld [vmem:[%s266 + $0x108] sm:$0xff]
        %v782 = vld [vmem:[%s266 + $0x110] sm:$0xff]
        %v783 = vld [vmem:[%s266 + $0x118] sm:$0xff]
        %v784 = vld [vmem:[%s266 + $0x120] sm:$0xff]
        %v785 = vld [vmem:[%s266 + $0x128] sm:$0xff]
        %v786 = vld [vmem:[%s266 + $0x130] sm:$0xff]
        %v787 = vld [vmem:[%s266 + $0x138] sm:$0xff]
        %v788 = vld [vmem:[%s266 + $0x140] sm:$0xff]
        %v789 = vld [vmem:[%s266 + $0x148] sm:$0xff]
        %v790 = vld [vmem:[%s266 + $0x150] sm:$0xff]
        %v791 = vld [vmem:[%s266 + $0x158] sm:$0xff]
        %v792 = vld [vmem:[%s266 + $0x160] sm:$0xff]
        %v793 = vld [vmem:[%s266 + $0x168] sm:$0xff]
        %v794 = vld [vmem:[%s266 + $0x170] sm:$0xff]
        %v795 = vld [vmem:[%s266 + $0x178] sm:$0xff]
        %v796 = vld [vmem:[%s266 + $0x180] sm:$0xff]
        %v797 = vld [vmem:[%s266 + $0x188] sm:$0xff]
        %v798 = vld [vmem:[%s266 + $0x190] sm:$0xff]
        %v799 = vld [vmem:[%s266 + $0x198] sm:$0xff]
        %v800 = vld [vmem:[%s266 + $0x1a0] sm:$0xff]
        %v801 = vld [vmem:[%s266 + $0x1a8] sm:$0xff]
        %v802 = vld [vmem:[%s266 + $0x1b0] sm:$0xff]
        %v803 = vld [vmem:[%s266 + $0x1b8] sm:$0xff]
        %v804 = vld [vmem:[%s266 + $0x1c0] sm:$0xff]
        %v805 = vld [vmem:[%s266 + $0x1c8] sm:$0xff]
        %v806 = vld [vmem:[%s266 + $0x1d0] sm:$0xff]
        %v807 = vld [vmem:[%s266 + $0x1d8] sm:$0xff]
        %v808 = vld [vmem:[%s266 + $0x1e0] sm:$0xff]
        %v809 = vld [vmem:[%s266 + $0x1e8] sm:$0xff]
        %v810 = vld [vmem:[%s266 + $0x1f0] sm:$0xff]
        %v811 = vld [vmem:[%s266 + $0x1f8] sm:$0xff]
        %v812 = vld [vmem:[%s266 + $0x200] sm:$0xff]
        %v813 = vadd.f32 %v748, %v425
        %v814 = vadd.f32 %v749, %v430
        %v815 = vadd.f32 %v750, %v435
        %v816 = vadd.f32 %v751, %v440
        %v817 = vadd.f32 %v752, %v445
        %v818 = vadd.f32 %v753, %v450
        %v819 = vadd.f32 %v754, %v455
        %v820 = vadd.f32 %v755, %v460
        %v821 = vadd.f32 %v756, %v465
        %v822 = vadd.f32 %v757, %v470
        %v823 = vadd.f32 %v758, %v475
        %v824 = vadd.f32 %v759, %v480
        %v825 = vadd.f32 %v760, %v485
        %v826 = vadd.f32 %v761, %v490
        %v827 = vadd.f32 %v762, %v495
        %v828 = vadd.f32 %v763, %v500
        %v829 = vadd.f32 %v764, %v505
        %v830 = vadd.f32 %v765, %v510
        %v831 = vadd.f32 %v766, %v515
        %v832 = vadd.f32 %v767, %v520
        %v833 = vadd.f32 %v768, %v525
        %v834 = vadd.f32 %v769, %v530
        %v835 = vadd.f32 %v770, %v535
        %v836 = vadd.f32 %v771, %v540
        %v837 = vadd.f32 %v772, %v545
        %v838 = vadd.f32 %v773, %v550
        %v839 = vadd.f32 %v774, %v555
        %v840 = vadd.f32 %v775, %v560
        %v841 = vadd.f32 %v776, %v565
        %v842 = vadd.f32 %v777, %v570
        %v843 = vadd.f32 %v778, %v575
        %v844 = vadd.f32 %v779, %v580
        %v845 = vadd.f32 %v780, %v585
        %v846 = vadd.f32 %v781, %v590
        %v847 = vadd.f32 %v782, %v595
        %v848 = vadd.f32 %v783, %v600
        %v849 = vadd.f32 %v784, %v605
        %v850 = vadd.f32 %v785, %v610
        %v851 = vadd.f32 %v786, %v615
        %v852 = vadd.f32 %v787, %v620
        %v853 = vadd.f32 %v788, %v625
        %v854 = vadd.f32 %v789, %v630
        %v855 = vadd.f32 %v790, %v635
        %v856 = vadd.f32 %v791, %v640
        %v857 = vadd.f32 %v792, %v645
        %v858 = vadd.f32 %v793, %v650
        %v859 = vadd.f32 %v794, %v655
        %v860 = vadd.f32 %v795, %v660
        %v861 = vadd.f32 %v796, %v665
        %v862 = vadd.f32 %v797, %v670
        %v863 = vadd.f32 %v798, %v675
        %v864 = vadd.f32 %v799, %v680
        %v865 = vadd.f32 %v800, %v685
        %v866 = vadd.f32 %v801, %v690
        %v867 = vadd.f32 %v802, %v695
        %v868 = vadd.f32 %v803, %v700
        %v869 = vadd.f32 %v804, %v705
        %v870 = vadd.f32 %v805, %v710
        %v871 = vadd.f32 %v806, %v715
        %v872 = vadd.f32 %v807, %v720
        %v873 = vadd.f32 %v808, %v725
        %v874 = vadd.f32 %v809, %v730
        %v875 = vadd.f32 %v810, %v735
        %v876 = vadd.f32 %v811, %v740
        %v877 = vadd.f32 %v812, %v745
        %s878 = sld [smem:[#allocation2]]
        %v879 = vstv %s878
        %v880 = vadd.f32 %v813, %v879
        %v881 = vadd.f32 %v814, %v879
        %v882 = vadd.f32 %v815, %v879
        %v883 = vadd.f32 %v816, %v879
        %v884 = vadd.f32 %v817, %v879
        %v885 = vadd.f32 %v818, %v879
        %v886 = vadd.f32 %v819, %v879
        %v887 = vadd.f32 %v820, %v879
        %v888 = vadd.f32 %v821, %v879
        %v889 = vadd.f32 %v822, %v879
        %v890 = vadd.f32 %v823, %v879
        %v891 = vadd.f32 %v824, %v879
        %v892 = vadd.f32 %v825, %v879
        %v893 = vadd.f32 %v826, %v879
        %v894 = vadd.f32 %v827, %v879
        %v895 = vadd.f32 %v828, %v879
        %v896 = vadd.f32 %v829, %v879
        %v897 = vadd.f32 %v830, %v879
        %v898 = vadd.f32 %v831, %v879
        %v899 = vadd.f32 %v832, %v879
        %v900 = vadd.f32 %v833, %v879
        %v901 = vadd.f32 %v834, %v879
        %v902 = vadd.f32 %v835, %v879
        %v903 = vadd.f32 %v836, %v879
        %v904 = vadd.f32 %v837, %v879
        %v905 = vadd.f32 %v838, %v879
        %v906 = vadd.f32 %v839, %v879
        %v907 = vadd.f32 %v840, %v879
        %v908 = vadd.f32 %v841, %v879
        %v909 = vadd.f32 %v842, %v879
        %v910 = vadd.f32 %v843, %v879
        %v911 = vadd.f32 %v844, %v879
        %v912 = vadd.f32 %v845, %v879
        %v913 = vadd.f32 %v846, %v879
        %v914 = vadd.f32 %v847, %v879
        %v915 = vadd.f32 %v848, %v879
        %v916 = vadd.f32 %v849, %v879
        %v917 = vadd.f32 %v850, %v879
        %v918 = vadd.f32 %v851, %v879
        %v919 = vadd.f32 %v852, %v879
        %v920 = vadd.f32 %v853, %v879
        %v921 = vadd.f32 %v854, %v879
        %v922 = vadd.f32 %v855, %v879
        %v923 = vadd.f32 %v856, %v879
        %v924 = vadd.f32 %v857, %v879
        %v925 = vadd.f32 %v858, %v879
        %v926 = vadd.f32 %v859, %v879
        %v927 = vadd.f32 %v860, %v879
        %v928 = vadd.f32 %v861, %v879
        %v929 = vadd.f32 %v862, %v879
        %v930 = vadd.f32 %v863, %v879
        %v931 = vadd.f32 %v864, %v879
        %v932 = vadd.f32 %v865, %v879
        %v933 = vadd.f32 %v866, %v879
        %v934 = vadd.f32 %v867, %v879
        %v935 = vadd.f32 %v868, %v879
        %v936 = vadd.f32 %v869, %v879
        %v937 = vadd.f32 %v870, %v879
        %v938 = vadd.f32 %v871, %v879
        %v939 = vadd.f32 %v872, %v879
        %v940 = vadd.f32 %v873, %v879
        %v941 = vadd.f32 %v874, %v879
        %v942 = vadd.f32 %v875, %v879
        %v943 = vadd.f32 %v876, %v879
        %v944 = vadd.f32 %v877, %v879
        %vm945 = vcmask 31744
        %946 = vst.msk [vmem:[%s243] sm:$0xff] %vm945, %v880
        %947 = vst.msk [vmem:[%s243 + $0x8] sm:$0xff] %vm945, %v881
        %948 = vst.msk [vmem:[%s243 + $0x10] sm:$0xff] %vm945, %v882
        %949 = vst.msk [vmem:[%s243 + $0x18] sm:$0xff] %vm945, %v883
        %950 = vst.msk [vmem:[%s243 + $0x20] sm:$0xff] %vm945, %v884
        %951 = vst.msk [vmem:[%s243 + $0x28] sm:$0xff] %vm945, %v885
        %952 = vst.msk [vmem:[%s243 + $0x30] sm:$0xff] %vm945, %v886
        %953 = vst.msk [vmem:[%s243 + $0x38] sm:$0xff] %vm945, %v887
        %954 = vst.msk [vmem:[%s243 + $0x40] sm:$0xff] %vm945, %v888
        %955 = vst.msk [vmem:[%s243 + $0x48] sm:$0xff] %vm945, %v889
        %956 = vst.msk [vmem:[%s243 + $0x50] sm:$0xff] %vm945, %v890
        %957 = vst.msk [vmem:[%s243 + $0x58] sm:$0xff] %vm945, %v891
        %958 = vst.msk [vmem:[%s243 + $0x60] sm:$0xff] %vm945, %v892
        %959 = vst.msk [vmem:[%s243 + $0x68] sm:$0xff] %vm945, %v893
        %960 = vst.msk [vmem:[%s243 + $0x70] sm:$0xff] %vm945, %v894
        %961 = vst.msk [vmem:[%s243 + $0x78] sm:$0xff] %vm945, %v895
        %962 = vst.msk [vmem:[%s243 + $0x80] sm:$0xff] %vm945, %v896
        %963 = vst.msk [vmem:[%s243 + $0x88] sm:$0xff] %vm945, %v897
        %964 = vst.msk [vmem:[%s243 + $0x90] sm:$0xff] %vm945, %v898
        %965 = vst.msk [vmem:[%s243 + $0x98] sm:$0xff] %vm945, %v899
        %966 = vst.msk [vmem:[%s243 + $0xa0] sm:$0xff] %vm945, %v900
        %967 = vst.msk [vmem:[%s243 + $0xa8] sm:$0xff] %vm945, %v901
        %968 = vst.msk [vmem:[%s243 + $0xb0] sm:$0xff] %vm945, %v902
        %969 = vst.msk [vmem:[%s243 + $0xb8] sm:$0xff] %vm945, %v903
        %970 = vst.msk [vmem:[%s243 + $0xc0] sm:$0xff] %vm945, %v904
        %971 = vst.msk [vmem:[%s243 + $0xc8] sm:$0xff] %vm945, %v905
        %972 = vst.msk [vmem:[%s243 + $0xd0] sm:$0xff] %vm945, %v906
        %973 = vst.msk [vmem:[%s243 + $0xd8] sm:$0xff] %vm945, %v907
        %974 = vst.msk [vmem:[%s243 + $0xe0] sm:$0xff] %vm945, %v908
        %975 = vst.msk [vmem:[%s243 + $0xe8] sm:$0xff] %vm945, %v909
        %976 = vst.msk [vmem:[%s243 + $0xf0] sm:$0xff] %vm945, %v910
        %977 = vst.msk [vmem:[%s243 + $0xf8] sm:$0xff] %vm945, %v911
        %978 = vst.msk [vmem:[%s243 + $0x100] sm:$0xff] %vm945, %v912
        %979 = vst.msk [vmem:[%s243 + $0x108] sm:$0xff] %vm945, %v913
        %980 = vst.msk [vmem:[%s243 + $0x110] sm:$0xff] %vm945, %v914
        %981 = vst.msk [vmem:[%s243 + $0x118] sm:$0xff] %vm945, %v915
        %982 = vst.msk [vmem:[%s243 + $0x120] sm:$0xff] %vm945, %v916
        %983 = vst.msk [vmem:[%s243 + $0x128] sm:$0xff] %vm945, %v917
        %984 = vst.msk [vmem:[%s243 + $0x130] sm:$0xff] %vm945, %v918
        %985 = vst.msk [vmem:[%s243 + $0x138] sm:$0xff] %vm945, %v919
        %986 = vst.msk [vmem:[%s243 + $0x140] sm:$0xff] %vm945, %v920
        %987 = vst.msk [vmem:[%s243 + $0x148] sm:$0xff] %vm945, %v921
        %988 = vst.msk [vmem:[%s243 + $0x150] sm:$0xff] %vm945, %v922
        %989 = vst.msk [vmem:[%s243 + $0x158] sm:$0xff] %vm945, %v923
        %990 = vst.msk [vmem:[%s243 + $0x160] sm:$0xff] %vm945, %v924
        %991 = vst.msk [vmem:[%s243 + $0x168] sm:$0xff] %vm945, %v925
        %992 = vst.msk [vmem:[%s243 + $0x170] sm:$0xff] %vm945, %v926
        %993 = vst.msk [vmem:[%s243 + $0x178] sm:$0xff] %vm945, %v927
        %994 = vst.msk [vmem:[%s243 + $0x180] sm:$0xff] %vm945, %v928
        %995 = vst.msk [vmem:[%s243 + $0x188] sm:$0xff] %vm945, %v929
        %996 = vst.msk [vmem:[%s243 + $0x190] sm:$0xff] %vm945, %v930
        %997 = vst.msk [vmem:[%s243 + $0x198] sm:$0xff] %vm945, %v931
        %998 = vst.msk [vmem:[%s243 + $0x1a0] sm:$0xff] %vm945, %v932
        %999 = vst.msk [vmem:[%s243 + $0x1a8] sm:$0xff] %vm945, %v933
        %1000 = vst.msk [vmem:[%s243 + $0x1b0] sm:$0xff] %vm945, %v934
        %1001 = vst.msk [vmem:[%s243 + $0x1b8] sm:$0xff] %vm945, %v935
        %1002 = vst.msk [vmem:[%s243 + $0x1c0] sm:$0xff] %vm945, %v936
        %1003 = vst.msk [vmem:[%s243 + $0x1c8] sm:$0xff] %vm945, %v937
        %1004 = vst.msk [vmem:[%s243 + $0x1d0] sm:$0xff] %vm945, %v938
        %1005 = vst.msk [vmem:[%s243 + $0x1d8] sm:$0xff] %vm945, %v939
        %1006 = vst.msk [vmem:[%s243 + $0x1e0] sm:$0xff] %vm945, %v940
        %1007 = vst.msk [vmem:[%s243 + $0x1e8] sm:$0xff] %vm945, %v941
        %1008 = vst.msk [vmem:[%s243 + $0x1f0] sm:$0xff] %vm945, %v942
        %1009 = vst.msk [vmem:[%s243 + $0x1f8] sm:$0xff] %vm945, %v943
        %1010 = vst.msk [vmem:[%s243 + $0x200] sm:$0xff] %vm945, %v944
        %s1011 = sand.u32 %s119, 1
        %s1012 = sand.u32 %s119, 1
        %s1013 = smul.addr %s1012, 520
        %s1014 = scalar_lea.vmem [#allocation5], %s1013
        // Predicated region
        $region41: #{tpu_custom_call.1} parent=35 // pred_check
          %p1015 = pneg %p129
        $region42: #{tpu_custom_call.1} parent=35 // pred_check_branch
          %1017 = sbr.rel (%p1015) target = $region44
        $region43: #{tpu_custom_call.1} parent=35 // pred_region
          %s1018 = smul.u32 65, %s17
          %s1019 = ssub.s32 257, %s1018
          %p1020 = scmp.lt.s32.totalorder %s1019, 65
          %s1021 = scalar_select %p1020, %s1019, 65
          %s1022 = smul.u32 128, %s1021
          %p1023 = scmp.ne.s32.totalorder 0, %s1022
          %s1024 = smul.addr %s1018, 8
          %s1025 = scalar_lea.vmem %s4, %s1024
          // Predicated region
          $region45: #{tpu_custom_call.1} parent=43 // pred_check
            %p1026 = pneg %p1023
          $region46: #{tpu_custom_call.1} parent=43 // pred_check_branch
            %1028 = sbr.rel (%p1026) target = $region48
          $region47: #{tpu_custom_call.1} parent=43 // pred_region
            // Predicated region
            $region49: #{tpu_custom_call.1} parent=47 // pred_check
              _
            $region50: #{tpu_custom_call.1} parent=47 // pred_check_branch
              %1030 = sbr.rel (0) target = $region52
            $region51: #{tpu_custom_call.1} parent=47 // pred_region
              // Predicated region
              $region71: #{tpu_custom_call.1} parent=51 // pred_check
                _
              $region72: #{tpu_custom_call.1} parent=51 // pred_check_branch
                %1205 = sbr.rel (0) target = $region74
              $region73: #{tpu_custom_call.1} parent=51 // pred_region
                %s1206 = sshrl.u32 %s1021, 6
                // While loop
                $region75: #{tpu_custom_call.1} parent=73 // loop_pre_header
                  _
                $region76: #{tpu_custom_call.1} parent=73 // loop_header
                  %s1208 = sphi 0, %s1210
                  %p1209 = scmp.ge.s32.totalorder %s1208, %s1206
                  %s1213 = sphi 0, %s1346
                  %s1214 = sphi %s1014, %s1349
                  %s1215 = sphi %s1025, %s1350
                $region77: #{tpu_custom_call.1} parent=73 // loop_header_branch
                  %1212 = sbr.rel (%p1209) target = $region81
                $region78: #{tpu_custom_call.1} parent=73 // loop_body
                  %v1216 = vld [vmem:[%s1214] sm:$0xff]
                  %1217 = vst [vmem:[%s1215] sm:$0xff] %v1216
                  %v1218 = vld [vmem:[%s1214 + $0x8] sm:$0xff]
                  %1219 = vst [vmem:[%s1215 + $0x8] sm:$0xff] %v1218
                  %v1220 = vld [vmem:[%s1214 + $0x10] sm:$0xff]
                  %1221 = vst [vmem:[%s1215 + $0x10] sm:$0xff] %v1220
                  %v1222 = vld [vmem:[%s1214 + $0x18] sm:$0xff]
                  %1223 = vst [vmem:[%s1215 + $0x18] sm:$0xff] %v1222
                  %v1224 = vld [vmem:[%s1214 + $0x20] sm:$0xff]
                  %1225 = vst [vmem:[%s1215 + $0x20] sm:$0xff] %v1224
                  %v1226 = vld [vmem:[%s1214 + $0x28] sm:$0xff]
                  %1227 = vst [vmem:[%s1215 + $0x28] sm:$0xff] %v1226
                  %v1228 = vld [vmem:[%s1214 + $0x30] sm:$0xff]
                  %1229 = vst [vmem:[%s1215 + $0x30] sm:$0xff] %v1228
                  %v1230 = vld [vmem:[%s1214 + $0x38] sm:$0xff]
                  %1231 = vst [vmem:[%s1215 + $0x38] sm:$0xff] %v1230
                  %v1232 = vld [vmem:[%s1214 + $0x40] sm:$0xff]
                  %1233 = vst [vmem:[%s1215 + $0x40] sm:$0xff] %v1232
                  %v1234 = vld [vmem:[%s1214 + $0x48] sm:$0xff]
                  %1235 = vst [vmem:[%s1215 + $0x48] sm:$0xff] %v1234
                  %v1236 = vld [vmem:[%s1214 + $0x50] sm:$0xff]
                  %1237 = vst [vmem:[%s1215 + $0x50] sm:$0xff] %v1236
                  %v1238 = vld [vmem:[%s1214 + $0x58] sm:$0xff]
                  %1239 = vst [vmem:[%s1215 + $0x58] sm:$0xff] %v1238
                  %v1240 = vld [vmem:[%s1214 + $0x60] sm:$0xff]
                  %1241 = vst [vmem:[%s1215 + $0x60] sm:$0xff] %v1240
                  %v1242 = vld [vmem:[%s1214 + $0x68] sm:$0xff]
                  %1243 = vst [vmem:[%s1215 + $0x68] sm:$0xff] %v1242
                  %v1244 = vld [vmem:[%s1214 + $0x70] sm:$0xff]
                  %1245 = vst [vmem:[%s1215 + $0x70] sm:$0xff] %v1244
                  %v1246 = vld [vmem:[%s1214 + $0x78] sm:$0xff]
                  %1247 = vst [vmem:[%s1215 + $0x78] sm:$0xff] %v1246
                  %v1248 = vld [vmem:[%s1214 + $0x80] sm:$0xff]
                  %1249 = vst [vmem:[%s1215 + $0x80] sm:$0xff] %v1248
                  %v1250 = vld [vmem:[%s1214 + $0x88] sm:$0xff]
                  %1251 = vst [vmem:[%s1215 + $0x88] sm:$0xff] %v1250
                  %v1252 = vld [vmem:[%s1214 + $0x90] sm:$0xff]
                  %1253 = vst [vmem:[%s1215 + $0x90] sm:$0xff] %v1252
                  %v1254 = vld [vmem:[%s1214 + $0x98] sm:$0xff]
                  %1255 = vst [vmem:[%s1215 + $0x98] sm:$0xff] %v1254
                  %v1256 = vld [vmem:[%s1214 + $0xa0] sm:$0xff]
                  %1257 = vst [vmem:[%s1215 + $0xa0] sm:$0xff] %v1256
                  %v1258 = vld [vmem:[%s1214 + $0xa8] sm:$0xff]
                  %1259 = vst [vmem:[%s1215 + $0xa8] sm:$0xff] %v1258
                  %v1260 = vld [vmem:[%s1214 + $0xb0] sm:$0xff]
                  %1261 = vst [vmem:[%s1215 + $0xb0] sm:$0xff] %v1260
                  %v1262 = vld [vmem:[%s1214 + $0xb8] sm:$0xff]
                  %1263 = vst [vmem:[%s1215 + $0xb8] sm:$0xff] %v1262
                  %v1264 = vld [vmem:[%s1214 + $0xc0] sm:$0xff]
                  %1265 = vst [vmem:[%s1215 + $0xc0] sm:$0xff] %v1264
                  %v1266 = vld [vmem:[%s1214 + $0xc8] sm:$0xff]
                  %1267 = vst [vmem:[%s1215 + $0xc8] sm:$0xff] %v1266
                  %v1268 = vld [vmem:[%s1214 + $0xd0] sm:$0xff]
                  %1269 = vst [vmem:[%s1215 + $0xd0] sm:$0xff] %v1268
                  %v1270 = vld [vmem:[%s1214 + $0xd8] sm:$0xff]
                  %1271 = vst [vmem:[%s1215 + $0xd8] sm:$0xff] %v1270
                  %v1272 = vld [vmem:[%s1214 + $0xe0] sm:$0xff]
                  %1273 = vst [vmem:[%s1215 + $0xe0] sm:$0xff] %v1272
                  %v1274 = vld [vmem:[%s1214 + $0xe8] sm:$0xff]
                  %1275 = vst [vmem:[%s1215 + $0xe8] sm:$0xff] %v1274
                  %v1276 = vld [vmem:[%s1214 + $0xf0] sm:$0xff]
                  %1277 = vst [vmem:[%s1215 + $0xf0] sm:$0xff] %v1276
                  %v1278 = vld [vmem:[%s1214 + $0xf8] sm:$0xff]
                  %1279 = vst [vmem:[%s1215 + $0xf8] sm:$0xff] %v1278
                  %v1280 = vld [vmem:[%s1214 + $0x100] sm:$0xff]
                  %1281 = vst [vmem:[%s1215 + $0x100] sm:$0xff] %v1280
                  %v1282 = vld [vmem:[%s1214 + $0x108] sm:$0xff]
                  %1283 = vst [vmem:[%s1215 + $0x108] sm:$0xff] %v1282
                  %v1284 = vld [vmem:[%s1214 + $0x110] sm:$0xff]
                  %1285 = vst [vmem:[%s1215 + $0x110] sm:$0xff] %v1284
                  %v1286 = vld [vmem:[%s1214 + $0x118] sm:$0xff]
                  %1287 = vst [vmem:[%s1215 + $0x118] sm:$0xff] %v1286
                  %v1288 = vld [vmem:[%s1214 + $0x120] sm:$0xff]
                  %1289 = vst [vmem:[%s1215 + $0x120] sm:$0xff] %v1288
                  %v1290 = vld [vmem:[%s1214 + $0x128] sm:$0xff]
                  %1291 = vst [vmem:[%s1215 + $0x128] sm:$0xff] %v1290
                  %v1292 = vld [vmem:[%s1214 + $0x130] sm:$0xff]
                  %1293 = vst [vmem:[%s1215 + $0x130] sm:$0xff] %v1292
                  %v1294 = vld [vmem:[%s1214 + $0x138] sm:$0xff]
                  %1295 = vst [vmem:[%s1215 + $0x138] sm:$0xff] %v1294
                  %v1296 = vld [vmem:[%s1214 + $0x140] sm:$0xff]
                  %1297 = vst [vmem:[%s1215 + $0x140] sm:$0xff] %v1296
                  %v1298 = vld [vmem:[%s1214 + $0x148] sm:$0xff]
                  %1299 = vst [vmem:[%s1215 + $0x148] sm:$0xff] %v1298
                  %v1300 = vld [vmem:[%s1214 + $0x150] sm:$0xff]
                  %1301 = vst [vmem:[%s1215 + $0x150] sm:$0xff] %v1300
                  %v1302 = vld [vmem:[%s1214 + $0x158] sm:$0xff]
                  %1303 = vst [vmem:[%s1215 + $0x158] sm:$0xff] %v1302
                  %v1304 = vld [vmem:[%s1214 + $0x160] sm:$0xff]
                  %1305 = vst [vmem:[%s1215 + $0x160] sm:$0xff] %v1304
                  %v1306 = vld [vmem:[%s1214 + $0x168] sm:$0xff]
                  %1307 = vst [vmem:[%s1215 + $0x168] sm:$0xff] %v1306
                  %v1308 = vld [vmem:[%s1214 + $0x170] sm:$0xff]
                  %1309 = vst [vmem:[%s1215 + $0x170] sm:$0xff] %v1308
                  %v1310 = vld [vmem:[%s1214 + $0x178] sm:$0xff]
                  %1311 = vst [vmem:[%s1215 + $0x178] sm:$0xff] %v1310
                  %v1312 = vld [vmem:[%s1214 + $0x180] sm:$0xff]
                  %1313 = vst [vmem:[%s1215 + $0x180] sm:$0xff] %v1312
                  %v1314 = vld [vmem:[%s1214 + $0x188] sm:$0xff]
                  %1315 = vst [vmem:[%s1215 + $0x188] sm:$0xff] %v1314
                  %v1316 = vld [vmem:[%s1214 + $0x190] sm:$0xff]
                  %1317 = vst [vmem:[%s1215 + $0x190] sm:$0xff] %v1316
                  %v1318 = vld [vmem:[%s1214 + $0x198] sm:$0xff]
                  %1319 = vst [vmem:[%s1215 + $0x198] sm:$0xff] %v1318
                  %v1320 = vld [vmem:[%s1214 + $0x1a0] sm:$0xff]
                  %1321 = vst [vmem:[%s1215 + $0x1a0] sm:$0xff] %v1320
                  %v1322 = vld [vmem:[%s1214 + $0x1a8] sm:$0xff]
                  %1323 = vst [vmem:[%s1215 + $0x1a8] sm:$0xff] %v1322
                  %v1324 = vld [vmem:[%s1214 + $0x1b0] sm:$0xff]
                  %1325 = vst [vmem:[%s1215 + $0x1b0] sm:$0xff] %v1324
                  %v1326 = vld [vmem:[%s1214 + $0x1b8] sm:$0xff]
                  %1327 = vst [vmem:[%s1215 + $0x1b8] sm:$0xff] %v1326
                  %v1328 = vld [vmem:[%s1214 + $0x1c0] sm:$0xff]
                  %1329 = vst [vmem:[%s1215 + $0x1c0] sm:$0xff] %v1328
                  %v1330 = vld [vmem:[%s1214 + $0x1c8] sm:$0xff]
                  %1331 = vst [vmem:[%s1215 + $0x1c8] sm:$0xff] %v1330
                  %v1332 = vld [vmem:[%s1214 + $0x1d0] sm:$0xff]
                  %1333 = vst [vmem:[%s1215 + $0x1d0] sm:$0xff] %v1332
                  %v1334 = vld [vmem:[%s1214 + $0x1d8] sm:$0xff]
                  %1335 = vst [vmem:[%s1215 + $0x1d8] sm:$0xff] %v1334
                  %v1336 = vld [vmem:[%s1214 + $0x1e0] sm:$0xff]
                  %1337 = vst [vmem:[%s1215 + $0x1e0] sm:$0xff] %v1336
                  %v1338 = vld [vmem:[%s1214 + $0x1e8] sm:$0xff]
                  %1339 = vst [vmem:[%s1215 + $0x1e8] sm:$0xff] %v1338
                  %v1340 = vld [vmem:[%s1214 + $0x1f0] sm:$0xff]
                  %1341 = vst [vmem:[%s1215 + $0x1f0] sm:$0xff] %v1340
                  %v1342 = vld [vmem:[%s1214 + $0x1f8] sm:$0xff]
                  %1343 = vst [vmem:[%s1215 + $0x1f8] sm:$0xff] %v1342
                  %s1344 = sadd.s32 1, %s1213
                  %p1345 = scmp.ge.s32.totalorder %s1344, %s1206
                  %s1346 = scalar_select %p1345, 0, %s1344
                  %s1347 = smul.u32 %s1346, 512
                  %s1348 = smul.u32 %s1346, 512
                  %s1349 = scalar_lea.vmem %s1014, %s1347 [#allocation5]
                  %s1350 = scalar_lea.vmem %s1025, %s1348
                $region79: #{tpu_custom_call.1} parent=73 // loop_footer
                  %s1210 = sadd.s32 %s1208, 1
                $region80: #{tpu_custom_call.1} parent=73 // loop_footer_branch
                  %1207 = sbr.rel target = $region76
                $region81: #{tpu_custom_call.1} parent=73 // loop_exit
                  _
                %s1351 = sshrl.u32 %s1021, 6
                %s1352 = sand.u32 %s1021, 63
                %s1353 = smul.u32 %s1351, 64
                %s1354 = smul.u32 8, %s1353
                %s1355 = scalar_lea.vmem %s1014, %s1354 [#allocation5]
                %s1356 = smul.u32 8, %s1353
                %s1357 = scalar_lea.vmem %s1025, %s1356
                // While loop
                $region82: #{tpu_custom_call.1} parent=73 // loop_pre_header
                  _
                $region83: #{tpu_custom_call.1} parent=73 // loop_header
                  %s1359 = sphi 0, %s1361
                  %p1360 = scmp.ge.s32.totalorder %s1359, %s1352
                  %s1364 = sphi 0, %s1371
                  %s1365 = sphi %s1355, %s1374
                  %s1366 = sphi %s1357, %s1375
                $region84: #{tpu_custom_call.1} parent=73 // loop_header_branch
                  %1363 = sbr.rel (%p1360) target = $region88
                $region85: #{tpu_custom_call.1} parent=73 // loop_body
                  %v1367 = vld [vmem:[%s1365] sm:$0xff]
                  %1368 = vst [vmem:[%s1366] sm:$0xff] %v1367
                  %s1369 = sadd.s32 1, %s1364
                  %p1370 = scmp.ge.s32.totalorder %s1369, %s1352
                  %s1371 = scalar_select %p1370, 0, %s1369
                  %s1372 = smul.u32 %s1371, 8
                  %s1373 = smul.u32 %s1371, 8
                  %s1374 = scalar_lea.vmem %s1355, %s1372 [#allocation5]
                  %s1375 = scalar_lea.vmem %s1357, %s1373
                $region86: #{tpu_custom_call.1} parent=73 // loop_footer
                  %s1361 = sadd.s32 %s1359, 1
                $region87: #{tpu_custom_call.1} parent=73 // loop_footer_branch
                  %1358 = sbr.rel target = $region83
                $region88: #{tpu_custom_call.1} parent=73 // loop_exit
                  _
              $region74: #{tpu_custom_call.1} parent=51 // pred_fallthru
                _
              // Predicated region
              $region89: #{tpu_custom_call.1} parent=51 // pred_check
                _
              $region90: #{tpu_custom_call.1} parent=51 // pred_check_branch
                %1377 = sbr.rel target = $region92
              $region91: #{tpu_custom_call.1} parent=51 // pred_region
                _
              $region92: #{tpu_custom_call.1} parent=51 // pred_fallthru
                _
            $region52: #{tpu_custom_call.1} parent=47 // pred_fallthru
              _
            // Predicated region
            $region53: #{tpu_custom_call.1} parent=47 // pred_check
              _
            $region54: #{tpu_custom_call.1} parent=47 // pred_check_branch
              %1032 = sbr.rel target = $region56
            $region55: #{tpu_custom_call.1} parent=47 // pred_region
              %s1034 = sshrl.u32 %s1021, 6
              // While loop
              $region57: #{tpu_custom_call.1} parent=55 // loop_pre_header
                _
              $region58: #{tpu_custom_call.1} parent=55 // loop_header
                %s1036 = sphi 0, %s1038
                %p1037 = scmp.ge.s32.totalorder %s1036, %s1034
                %s1041 = sphi 0, %s1174
                %s1042 = sphi %s1014, %s1177
                %s1043 = sphi %s1025, %s1178
              $region59: #{tpu_custom_call.1} parent=55 // loop_header_branch
                %1040 = sbr.rel (%p1037) target = $region63
              $region60: #{tpu_custom_call.1} parent=55 // loop_body
                %v1044 = vld [vmem:[%s1042] sm:$0xff]
                %1045 = vst [vmem:[%s1043] sm:$0xff] %v1044
                %v1046 = vld [vmem:[%s1042 + $0x8] sm:$0xff]
                %1047 = vst [vmem:[%s1043 + $0x8] sm:$0xff] %v1046
                %v1048 = vld [vmem:[%s1042 + $0x10] sm:$0xff]
                %1049 = vst [vmem:[%s1043 + $0x10] sm:$0xff] %v1048
                %v1050 = vld [vmem:[%s1042 + $0x18] sm:$0xff]
                %1051 = vst [vmem:[%s1043 + $0x18] sm:$0xff] %v1050
                %v1052 = vld [vmem:[%s1042 + $0x20] sm:$0xff]
                %1053 = vst [vmem:[%s1043 + $0x20] sm:$0xff] %v1052
                %v1054 = vld [vmem:[%s1042 + $0x28] sm:$0xff]
                %1055 = vst [vmem:[%s1043 + $0x28] sm:$0xff] %v1054
                %v1056 = vld [vmem:[%s1042 + $0x30] sm:$0xff]
                %1057 = vst [vmem:[%s1043 + $0x30] sm:$0xff] %v1056
                %v1058 = vld [vmem:[%s1042 + $0x38] sm:$0xff]
                %1059 = vst [vmem:[%s1043 + $0x38] sm:$0xff] %v1058
                %v1060 = vld [vmem:[%s1042 + $0x40] sm:$0xff]
                %1061 = vst [vmem:[%s1043 + $0x40] sm:$0xff] %v1060
                %v1062 = vld [vmem:[%s1042 + $0x48] sm:$0xff]
                %1063 = vst [vmem:[%s1043 + $0x48] sm:$0xff] %v1062
                %v1064 = vld [vmem:[%s1042 + $0x50] sm:$0xff]
                %1065 = vst [vmem:[%s1043 + $0x50] sm:$0xff] %v1064
                %v1066 = vld [vmem:[%s1042 + $0x58] sm:$0xff]
                %1067 = vst [vmem:[%s1043 + $0x58] sm:$0xff] %v1066
                %v1068 = vld [vmem:[%s1042 + $0x60] sm:$0xff]
                %1069 = vst [vmem:[%s1043 + $0x60] sm:$0xff] %v1068
                %v1070 = vld [vmem:[%s1042 + $0x68] sm:$0xff]
                %1071 = vst [vmem:[%s1043 + $0x68] sm:$0xff] %v1070
                %v1072 = vld [vmem:[%s1042 + $0x70] sm:$0xff]
                %1073 = vst [vmem:[%s1043 + $0x70] sm:$0xff] %v1072
                %v1074 = vld [vmem:[%s1042 + $0x78] sm:$0xff]
                %1075 = vst [vmem:[%s1043 + $0x78] sm:$0xff] %v1074
                %v1076 = vld [vmem:[%s1042 + $0x80] sm:$0xff]
                %1077 = vst [vmem:[%s1043 + $0x80] sm:$0xff] %v1076
                %v1078 = vld [vmem:[%s1042 + $0x88] sm:$0xff]
                %1079 = vst [vmem:[%s1043 + $0x88] sm:$0xff] %v1078
                %v1080 = vld [vmem:[%s1042 + $0x90] sm:$0xff]
                %1081 = vst [vmem:[%s1043 + $0x90] sm:$0xff] %v1080
                %v1082 = vld [vmem:[%s1042 + $0x98] sm:$0xff]
                %1083 = vst [vmem:[%s1043 + $0x98] sm:$0xff] %v1082
                %v1084 = vld [vmem:[%s1042 + $0xa0] sm:$0xff]
                %1085 = vst [vmem:[%s1043 + $0xa0] sm:$0xff] %v1084
                %v1086 = vld [vmem:[%s1042 + $0xa8] sm:$0xff]
                %1087 = vst [vmem:[%s1043 + $0xa8] sm:$0xff] %v1086
                %v1088 = vld [vmem:[%s1042 + $0xb0] sm:$0xff]
                %1089 = vst [vmem:[%s1043 + $0xb0] sm:$0xff] %v1088
                %v1090 = vld [vmem:[%s1042 + $0xb8] sm:$0xff]
                %1091 = vst [vmem:[%s1043 + $0xb8] sm:$0xff] %v1090
                %v1092 = vld [vmem:[%s1042 + $0xc0] sm:$0xff]
                %1093 = vst [vmem:[%s1043 + $0xc0] sm:$0xff] %v1092
                %v1094 = vld [vmem:[%s1042 + $0xc8] sm:$0xff]
                %1095 = vst [vmem:[%s1043 + $0xc8] sm:$0xff] %v1094
                %v1096 = vld [vmem:[%s1042 + $0xd0] sm:$0xff]
                %1097 = vst [vmem:[%s1043 + $0xd0] sm:$0xff] %v1096
                %v1098 = vld [vmem:[%s1042 + $0xd8] sm:$0xff]
                %1099 = vst [vmem:[%s1043 + $0xd8] sm:$0xff] %v1098
                %v1100 = vld [vmem:[%s1042 + $0xe0] sm:$0xff]
                %1101 = vst [vmem:[%s1043 + $0xe0] sm:$0xff] %v1100
                %v1102 = vld [vmem:[%s1042 + $0xe8] sm:$0xff]
                %1103 = vst [vmem:[%s1043 + $0xe8] sm:$0xff] %v1102
                %v1104 = vld [vmem:[%s1042 + $0xf0] sm:$0xff]
                %1105 = vst [vmem:[%s1043 + $0xf0] sm:$0xff] %v1104
                %v1106 = vld [vmem:[%s1042 + $0xf8] sm:$0xff]
                %1107 = vst [vmem:[%s1043 + $0xf8] sm:$0xff] %v1106
                %v1108 = vld [vmem:[%s1042 + $0x100] sm:$0xff]
                %1109 = vst [vmem:[%s1043 + $0x100] sm:$0xff] %v1108
                %v1110 = vld [vmem:[%s1042 + $0x108] sm:$0xff]
                %1111 = vst [vmem:[%s1043 + $0x108] sm:$0xff] %v1110
                %v1112 = vld [vmem:[%s1042 + $0x110] sm:$0xff]
                %1113 = vst [vmem:[%s1043 + $0x110] sm:$0xff] %v1112
                %v1114 = vld [vmem:[%s1042 + $0x118] sm:$0xff]
                %1115 = vst [vmem:[%s1043 + $0x118] sm:$0xff] %v1114
                %v1116 = vld [vmem:[%s1042 + $0x120] sm:$0xff]
                %1117 = vst [vmem:[%s1043 + $0x120] sm:$0xff] %v1116
                %v1118 = vld [vmem:[%s1042 + $0x128] sm:$0xff]
                %1119 = vst [vmem:[%s1043 + $0x128] sm:$0xff] %v1118
                %v1120 = vld [vmem:[%s1042 + $0x130] sm:$0xff]
                %1121 = vst [vmem:[%s1043 + $0x130] sm:$0xff] %v1120
                %v1122 = vld [vmem:[%s1042 + $0x138] sm:$0xff]
                %1123 = vst [vmem:[%s1043 + $0x138] sm:$0xff] %v1122
                %v1124 = vld [vmem:[%s1042 + $0x140] sm:$0xff]
                %1125 = vst [vmem:[%s1043 + $0x140] sm:$0xff] %v1124
                %v1126 = vld [vmem:[%s1042 + $0x148] sm:$0xff]
                %1127 = vst [vmem:[%s1043 + $0x148] sm:$0xff] %v1126
                %v1128 = vld [vmem:[%s1042 + $0x150] sm:$0xff]
                %1129 = vst [vmem:[%s1043 + $0x150] sm:$0xff] %v1128
                %v1130 = vld [vmem:[%s1042 + $0x158] sm:$0xff]
                %1131 = vst [vmem:[%s1043 + $0x158] sm:$0xff] %v1130
                %v1132 = vld [vmem:[%s1042 + $0x160] sm:$0xff]
                %1133 = vst [vmem:[%s1043 + $0x160] sm:$0xff] %v1132
                %v1134 = vld [vmem:[%s1042 + $0x168] sm:$0xff]
                %1135 = vst [vmem:[%s1043 + $0x168] sm:$0xff] %v1134
                %v1136 = vld [vmem:[%s1042 + $0x170] sm:$0xff]
                %1137 = vst [vmem:[%s1043 + $0x170] sm:$0xff] %v1136
                %v1138 = vld [vmem:[%s1042 + $0x178] sm:$0xff]
                %1139 = vst [vmem:[%s1043 + $0x178] sm:$0xff] %v1138
                %v1140 = vld [vmem:[%s1042 + $0x180] sm:$0xff]
                %1141 = vst [vmem:[%s1043 + $0x180] sm:$0xff] %v1140
                %v1142 = vld [vmem:[%s1042 + $0x188] sm:$0xff]
                %1143 = vst [vmem:[%s1043 + $0x188] sm:$0xff] %v1142
                %v1144 = vld [vmem:[%s1042 + $0x190] sm:$0xff]
                %1145 = vst [vmem:[%s1043 + $0x190] sm:$0xff] %v1144
                %v1146 = vld [vmem:[%s1042 + $0x198] sm:$0xff]
                %1147 = vst [vmem:[%s1043 + $0x198] sm:$0xff] %v1146
                %v1148 = vld [vmem:[%s1042 + $0x1a0] sm:$0xff]
                %1149 = vst [vmem:[%s1043 + $0x1a0] sm:$0xff] %v1148
                %v1150 = vld [vmem:[%s1042 + $0x1a8] sm:$0xff]
                %1151 = vst [vmem:[%s1043 + $0x1a8] sm:$0xff] %v1150
                %v1152 = vld [vmem:[%s1042 + $0x1b0] sm:$0xff]
                %1153 = vst [vmem:[%s1043 + $0x1b0] sm:$0xff] %v1152
                %v1154 = vld [vmem:[%s1042 + $0x1b8] sm:$0xff]
                %1155 = vst [vmem:[%s1043 + $0x1b8] sm:$0xff] %v1154
                %v1156 = vld [vmem:[%s1042 + $0x1c0] sm:$0xff]
                %1157 = vst [vmem:[%s1043 + $0x1c0] sm:$0xff] %v1156
                %v1158 = vld [vmem:[%s1042 + $0x1c8] sm:$0xff]
                %1159 = vst [vmem:[%s1043 + $0x1c8] sm:$0xff] %v1158
                %v1160 = vld [vmem:[%s1042 + $0x1d0] sm:$0xff]
                %1161 = vst [vmem:[%s1043 + $0x1d0] sm:$0xff] %v1160
                %v1162 = vld [vmem:[%s1042 + $0x1d8] sm:$0xff]
                %1163 = vst [vmem:[%s1043 + $0x1d8] sm:$0xff] %v1162
                %v1164 = vld [vmem:[%s1042 + $0x1e0] sm:$0xff]
                %1165 = vst [vmem:[%s1043 + $0x1e0] sm:$0xff] %v1164
                %v1166 = vld [vmem:[%s1042 + $0x1e8] sm:$0xff]
                %1167 = vst [vmem:[%s1043 + $0x1e8] sm:$0xff] %v1166
                %v1168 = vld [vmem:[%s1042 + $0x1f0] sm:$0xff]
                %1169 = vst [vmem:[%s1043 + $0x1f0] sm:$0xff] %v1168
                %v1170 = vld [vmem:[%s1042 + $0x1f8] sm:$0xff]
                %1171 = vst [vmem:[%s1043 + $0x1f8] sm:$0xff] %v1170
                %s1172 = sadd.s32 1, %s1041
                %p1173 = scmp.ge.s32.totalorder %s1172, %s1034
                %s1174 = scalar_select %p1173, 0, %s1172
                %s1175 = smul.u32 %s1174, 512
                %s1176 = smul.u32 %s1174, 512
                %s1177 = scalar_lea.vmem %s1014, %s1175 [#allocation5]
                %s1178 = scalar_lea.vmem %s1025, %s1176
              $region61: #{tpu_custom_call.1} parent=55 // loop_footer
                %s1038 = sadd.s32 %s1036, 1
              $region62: #{tpu_custom_call.1} parent=55 // loop_footer_branch
                %1035 = sbr.rel target = $region58
              $region63: #{tpu_custom_call.1} parent=55 // loop_exit
                _
              %s1179 = sshrl.u32 %s1021, 6
              %s1180 = sand.u32 %s1021, 63
              %s1181 = smul.u32 %s1179, 64
              %s1182 = smul.u32 8, %s1181
              %s1183 = scalar_lea.vmem %s1014, %s1182 [#allocation5]
              %s1184 = smul.u32 8, %s1181
              %s1185 = scalar_lea.vmem %s1025, %s1184
              // While loop
              $region64: #{tpu_custom_call.1} parent=55 // loop_pre_header
                _
              $region65: #{tpu_custom_call.1} parent=55 // loop_header
                %s1187 = sphi 0, %s1189
                %p1188 = scmp.ge.s32.totalorder %s1187, %s1180
                %s1192 = sphi 0, %s1199
                %s1193 = sphi %s1183, %s1202
                %s1194 = sphi %s1185, %s1203
              $region66: #{tpu_custom_call.1} parent=55 // loop_header_branch
                %1191 = sbr.rel (%p1188) target = $region70
              $region67: #{tpu_custom_call.1} parent=55 // loop_body
                %v1195 = vld [vmem:[%s1193] sm:$0xff]
                %1196 = vst [vmem:[%s1194] sm:$0xff] %v1195
                %s1197 = sadd.s32 1, %s1192
                %p1198 = scmp.ge.s32.totalorder %s1197, %s1180
                %s1199 = scalar_select %p1198, 0, %s1197
                %s1200 = smul.u32 %s1199, 8
                %s1201 = smul.u32 %s1199, 8
                %s1202 = scalar_lea.vmem %s1183, %s1200 [#allocation5]
                %s1203 = scalar_lea.vmem %s1185, %s1201
              $region68: #{tpu_custom_call.1} parent=55 // loop_footer
                %s1189 = sadd.s32 %s1187, 1
              $region69: #{tpu_custom_call.1} parent=55 // loop_footer_branch
                %1186 = sbr.rel target = $region65
              $region70: #{tpu_custom_call.1} parent=55 // loop_exit
                _
            $region56: #{tpu_custom_call.1} parent=47 // pred_fallthru
              _
          $region48: #{tpu_custom_call.1} parent=43 // pred_fallthru
            _
          %1378 = vnop
        $region44: #{tpu_custom_call.1} parent=35 // pred_fallthru
          _
      $region36: #{tpu_custom_call.1} parent=5 // pred_fallthru
        _
      %p1379 = scmp.le.s32.totalorder 2, %s12
      // Predicated region
      $region93: #{tpu_custom_call.1} parent=5 // pred_check
        %p1380 = pneg %p1379
      $region94: #{tpu_custom_call.1} parent=5 // pred_check_branch
        %1382 = sbr.rel (%p1380) target = $region96
      $region95: #{tpu_custom_call.1} parent=5 // pred_region
        %s1383 = ssub.s32 %s12, 2
        // Predicated region
        $region97: #{tpu_custom_call.1} parent=95 // pred_check
          %p1384 = pneg %p135
        $region98: #{tpu_custom_call.1} parent=95 // pred_check_branch
          %1386 = sbr.rel (%p1384) target = $region100
        $region99: #{tpu_custom_call.1} parent=95 // pred_region
          %s1387 = sand.u32 %s120, 1
          %s1388 = sand.u32 %s120, 1
          %s1389 = smul.addr %s1388, 520
          %s1390 = scalar_lea.vmem [#allocation5], %s1389
        $region100: #{tpu_custom_call.1} parent=95 // pred_fallthru
          _
      $region96: #{tpu_custom_call.1} parent=5 // pred_fallthru
        _
    $region6: #{tpu_custom_call.1} parent=1 // loop_footer
      %s16 = sadd.s32 1, %s12
    $region7: #{tpu_custom_call.1} parent=1 // loop_footer_branch
      %11 = sbr.rel target = $region3
    $region8: #{tpu_custom_call.1} parent=1 // loop_exit
      _
    %1391 = vsyncpa [#allocation4], 1
    %s1392 = scalar_lea.sflag [#allocation4], 1
    %1393 = vsyncpa %s1392, 1

</llo_original>
